<compile_context>
chip_gen: v7x
topology: tpu7x:2x2x1
jax: 0.10.0
libtpu: 0.0.40
codegen_flags: <defaults>
</compile_context>

<pallas_src>
import jax
import jax.numpy as jnp
from jax import lax
from jax.experimental import pallas as pl
from jax.experimental.pallas import tpu as pltpu

VMEM_SPEC = pl.BlockSpec(memory_space=pltpu.MemorySpace.VMEM)


# ------------------------------ fused kernel ------------------------------- #
#
# p1_ref : (576, 75)  conv1 patch matrix.  Row index
#          r = (((c*2+d)*9 + kh*3+kw)*4 + a*2+b)*4 + ho*2+wo
#          where (c,d)=conv1 pool quadrant, (kh,kw)=conv2 kernel offset,
#          (a,b)=conv2 pool quadrant, (ho,wo)=final pooled position.
#          Column index = (ci*5 + gh)*5 + gw  (conv1 receptive field).
# w1_ref : (75, 6)    conv1 weight, rows ordered (ci, gh, gw).
# w2_ref : (9, 6, 16) conv2 weight, w2_ref[k][ci, co] = W2[co, ci, kh, kw], k = kh*3+kw.
# wf1_ref: (64, 120)  fc1 weight with rows pre-permuted to ( (ho*2+wo)*16 + channel ).
def lenet_kernel(p1_ref, w1_ref, b1_ref, w2_ref, b2_ref,
                 wf1_ref, bf1_ref, wf2_ref, bf2_ref, wf3_ref, bf3_ref, o_ref):
    f32 = jnp.float32

    # ---- conv1 (+ fused 2x2 max-pool): a single MXU matmul over all rows ----
    c1 = jnp.dot(p1_ref[...], w1_ref[...], preferred_element_type=f32)      # (576, 6)
    # max over the 4 conv1-quadrant row blocks (all offsets 8-aligned).
    y1 = jnp.maximum(jnp.maximum(c1[0:144], c1[144:288]),
                     jnp.maximum(c1[288:432], c1[432:576]))                 # (144, 6)
    y1 = jnp.maximum(y1 + b1_ref[...], 0.0)
    # y1 rows are ordered (k = conv2 kernel offset, q = conv2 quadrant, p = pooled pos).

    # ---- conv2 (+ fused 2x2 max-pool): 9 kernel-offset blocks, summed -------
    c2 = jnp.dot(y1[0:16, :], w2_ref[0], preferred_element_type=f32)        # (16, 16)
    for k in range(1, 9):
        c2 = c2 + jnp.dot(y1[16 * k:16 * k + 16, :], w2_ref[k],
                          preferred_element_type=f32)
    # max over the 4 conv2-quadrant row blocks, then bias + ReLU.
    z = jnp.maximum(jnp.maximum(c2[0:4], c2[4:8]),
                    jnp.maximum(c2[8:12], c2[12:16]))                       # (4, 16)
    z = jnp.maximum(z + b2_ref[...], 0.0)       # rows = pooled pos p, cols = 16 chan

    # ---- fc1 on the flattened features without any in-kernel reshape --------
    # x.view(-1) @ Wf1  ==  sum_p  z[p, :] @ Wf1[16p:16p+16, :]   (rows pre-permuted).
    wf1 = wf1_ref[...]                                                      # (64, 120)
    h = bf1_ref[...] + jnp.dot(z[0:1, :], wf1[0:16, :],
                               preferred_element_type=f32)
    for p in range(1, 4):
        h = h + jnp.dot(z[p:p + 1, :], wf1[16 * p:16 * p + 16, :],
                        preferred_element_type=f32)
    h = jnp.maximum(h, 0.0)                                                 # (1, 120)

    # ---- fc2 -> ReLU -> fc3 --------------------------------------------------
    h = jnp.maximum(jnp.dot(h, wf2_ref[...], preferred_element_type=f32)
                    + bf2_ref[...], 0.0)                                    # (1, 84)
    o_ref[...] = (jnp.dot(h, wf3_ref[...], preferred_element_type=f32)
                  + bf3_ref[...])                                           # (1, 3)


# ------------------------------ JAX wrapper -------------------------------- #

def build_patches(x_chw):
    """(3,16,16) -> (576,75) conv1 patch matrix in the fused, duplicated layout.

    P1[r, (ci,gh,gw)] = x[ci, 2*(2*ho+a+kh) + c + gh, 2*(2*wo+b+kw) + d + gw]
    with r = (((c*2+d)*9 + kh*3+kw)*4 + a*2+b)*4 + ho*2+wo.
    Built with static (strided) slices + stacks only -> one small XLA fusion.
    """
    # A[gh, gw, ci, i, j] = x[ci, i+gh, j+gw],   i, j in 0..11
    A = jnp.stack([jnp.stack([x_chw[:, gh:gh + 12, gw:gw + 12]
                              for gw in range(5)], 0)
                   for gh in range(5)], 0)                    # (5,5,3,12,12)
    # B[c, d, gh, gw, ci, h1, w1] = A[gh, gw, ci, 2*h1+c, 2*w1+d],   h1, w1 in 0..5
    B = jnp.stack([jnp.stack([A[..., c::2, d::2] for d in range(2)], 0)
                   for c in range(2)], 0)                     # (2,2,5,5,3,6,6)
    # C[kh, a, c, d, gh, gw, ci, ho, w1] = B[c, d, gh, gw, ci, 2*ho+a+kh, w1]
    C = jnp.stack([jnp.stack([B[..., kh + a:kh + a + 3:2, :] for a in range(2)], 0)
                   for kh in range(3)], 0)                    # (3,2,2,2,5,5,3,2,6)
    # D[kw, b, kh, a, c, d, gh, gw, ci, ho, wo] = C[..., 2*wo+b+kw]
    D = jnp.stack([jnp.stack([C[..., kw + b:kw + b + 3:2] for b in range(2)], 0)
                   for kw in range(3)], 0)                    # (3,2,3,2,2,2,5,5,3,2,2)
    # reorder to (c, d, kh, kw, a, b, ho, wo, ci, gh, gw) and flatten.
    P = D.transpose(4, 5, 2, 0, 3, 1, 9, 10, 8, 6, 7)         # (2,2,3,3,2,2,2,2,3,5,5)
    return P.reshape(576, 75)


def lenet_forward(x_nchw, kp):
    x = x_nchw[0]                       # batch folded by torch's x.view(-1) (batch = 1)
    p1 = build_patches(x)               # (576, 75)
    out = pl.pallas_call(
        lenet_kernel,
        out_shape=jax.ShapeDtypeStruct((1, 3), jnp.float32),
        in_specs=[VMEM_SPEC] * 11,
        out_specs=VMEM_SPEC,
    )(p1, kp["w1"], kp["b1"], kp["w2"], kp["b2"],
      kp["wf1"], kp["bf1"], kp["wf2"], kp["bf2"], kp["wf3"], kp["bf3"])
    return out[0]                       # (3,)


def prepare_params(p):
    """One-time repack of torch-layout params into kernel layout (outside hot path)."""
    return {
        # conv1: OIHW (6,3,5,5) -> (Cin*KH*KW, Cout), row order (ci, gh, gw).
        "w1": p["conv1_w"].reshape(6, 75).T,
        "b1": p["conv1_b"].reshape(1, 6),
        # conv2: OIHW (16,6,3,3) -> (k, Cin, Cout) with k = kh*3 + kw.
        "w2": p["conv2_w"].transpose(2, 3, 1, 0).reshape(9, 6, 16),
        "b2": p["conv2_b"].reshape(1, 16),
        # fc1: torch flatten order is (c, h, w); kernel flatten order is ((h, w), c).
        "wf1": p["fc1_w"].reshape(16, 2, 2, 120).transpose(1, 2, 0, 3).reshape(64, 120),
        "bf1": p["fc1_b"].reshape(1, 120),
        "wf2": p["fc2_w"], "bf2": p["fc2_b"].reshape(1, 84),
        "wf3": p["fc3_w"], "bf3": p["fc3_b"].reshape(1, 3),
    }


# ------------------------- reference & param setup ------------------------- #

def reference_forward(x_nchw, p):
    dn = ("NCHW", "OIHW", "NCHW")
    y = lax.conv_general_dilated(x_nchw, p["conv1_w"], (1, 1), "VALID",
                                 dimension_numbers=dn)
    y = jnp.maximum(y + p["conv1_b"][None, :, None, None], 0.0)
    y = lax.reduce_window(y, -jnp.inf, lax.max, (1, 1, 2, 2), (1, 1, 2, 2), "VALID")
    y = lax.conv_general_dilated(y, p["conv2_w"], (1, 1), "VALID",
                                 dimension_numbers=dn)
    y = jnp.maximum(y + p["conv2_b"][None, :, None, None], 0.0)
    y = lax.reduce_window(y, -jnp.inf, lax.max, (1, 1, 2, 2), (1, 1, 2, 2), "VALID")
    v = y.reshape(-1)
    h = jnp.maximum(v @ p["fc1_w"] + p["fc1_b"], 0.0)
    h = jnp.maximum(h @ p["fc2_w"] + p["fc2_b"], 0.0)
    return h @ p["fc3_w"] + p["fc3_b"]


def init_params(key, flat_features):
    ks = jax.random.split(key, 10)
    f32 = jnp.float32
    return {
        "conv1_w": 0.1 * jax.random.normal(ks[0], (6, 3, 5, 5), f32),
        "conv1_b": 0.1 * jax.random.normal(ks[1], (6,), f32),
        "conv2_w": 0.1 * jax.random.normal(ks[2], (16, 6, 3, 3), f32),
        "conv2_b": 0.1 * jax.random.normal(ks[3], (16,), f32),
        # FC weights stored as (in, out) == torch_weight.T
        "fc1_w": 0.1 * jax.random.normal(ks[4], (flat_features, 120), f32),
        "fc1_b": 0.1 * jax.random.normal(ks[5], (120,), f32),
        "fc2_w": 0.1 * jax.random.normal(ks[6], (120, 84), f32),
        "fc2_b": 0.1 * jax.random.normal(ks[7], (84,), f32),
        "fc3_w": 0.1 * jax.random.normal(ks[8], (84, 3), f32),
        "fc3_b": 0.1 * jax.random.normal(ks[9], (3,), f32),
    }


if __name__ == "__main__":
    key = jax.random.PRNGKey(0)
    kx, kparam = jax.random.split(key)

    # 16x16 input: conv1(k5) -> 12 -> pool -> 6 ; conv2(k3) -> 4 -> pool -> 2
    # flattened features = 16 * 2 * 2 = 64 (this fixes LazyLinear's in_features).
    x = jax.random.normal(kx, (1, 3, 16, 16), jnp.float32)
    params = init_params(kparam, 16 * 2 * 2)
    kernel_params = prepare_params(params)      # one-time layout transform

    fwd = jax.jit(lenet_forward)
    out = jax.block_until_ready(fwd(x, kernel_params))

    ref = reference_forward(x, params)
    assert out.shape == (3,), out.shape
    assert jnp.allclose(out, ref, atol=1e-4, rtol=1e-4), (out, ref)
    print("KERNEL_OK")
</pallas_src>

<mosaic_0001>
module attributes {stable_mosaic.version = 11 : i64} {
  func.func @lenet_kernel(%arg0: memref<576x75xf32, #tpu.memory_space<vmem>>, %arg1: memref<75x6xf32, #tpu.memory_space<vmem>>, %arg2: memref<1x6xf32, #tpu.memory_space<vmem>>, %arg3: memref<9x6x16xf32, #tpu.memory_space<vmem>>, %arg4: memref<1x16xf32, #tpu.memory_space<vmem>>, %arg5: memref<64x120xf32, #tpu.memory_space<vmem>>, %arg6: memref<1x120xf32, #tpu.memory_space<vmem>>, %arg7: memref<120x84xf32, #tpu.memory_space<vmem>>, %arg8: memref<1x84xf32, #tpu.memory_space<vmem>>, %arg9: memref<84x3xf32, #tpu.memory_space<vmem>>, %arg10: memref<1x3xf32, #tpu.memory_space<vmem>>, %arg11: memref<1x3xf32, #tpu.memory_space<vmem>>) attributes {dimension_semantics = [], scalar_prefetch = 0 : i64, scratch_operands = 0 : i64, tpu.core_type = #tpu.core_type<tc>} {
    %c0 = arith.constant 0 : index
    %c0_0 = arith.constant 0 : index
    %0 = vector.load %arg0[%c0, %c0_0] : memref<576x75xf32, #tpu.memory_space<vmem>>, vector<576x75xf32>
    %c0_1 = arith.constant 0 : index
    %c0_2 = arith.constant 0 : index
    %1 = vector.load %arg1[%c0_1, %c0_2] : memref<75x6xf32, #tpu.memory_space<vmem>>, vector<75x6xf32>
    %cst = arith.constant dense<0.000000e+00> : vector<576x6xf32>
    %2 = tpu.matmul %0, %1, %cst {dimension_numbers = #tpu.dot_dimension_numbers<[1], [0], [0], [1], [0, 0, 1, 1], [], []>} : vector<576x75xf32>, vector<75x6xf32>, vector<576x6xf32> -> vector<576x6xf32>
    %3 = vector.extract_strided_slice %2 {offsets = [0, 0], sizes = [144, 6], strides = [1, 1]} : vector<576x6xf32> to vector<144x6xf32>
    %4 = vector.extract_strided_slice %2 {offsets = [144, 0], sizes = [144, 6], strides = [1, 1]} : vector<576x6xf32> to vector<144x6xf32>
    %5 = arith.maximumf %3, %4 : vector<144x6xf32>
    %6 = vector.extract_strided_slice %2 {offsets = [288, 0], sizes = [144, 6], strides = [1, 1]} : vector<576x6xf32> to vector<144x6xf32>
    %7 = vector.extract_strided_slice %2 {offsets = [432, 0], sizes = [144, 6], strides = [1, 1]} : vector<576x6xf32> to vector<144x6xf32>
    %8 = arith.maximumf %6, %7 : vector<144x6xf32>
    %9 = arith.maximumf %5, %8 : vector<144x6xf32>
    %c0_3 = arith.constant 0 : index
    %c0_4 = arith.constant 0 : index
    %10 = vector.load %arg2[%c0_3, %c0_4] : memref<1x6xf32, #tpu.memory_space<vmem>>, vector<1x6xf32>
    %11 = vector.broadcast %10 : vector<1x6xf32> to vector<144x6xf32>
    %12 = arith.addf %9, %11 : vector<144x6xf32>
    %cst_5 = arith.constant 0.000000e+00 : f32
    %13 = vector.broadcast %cst_5 : f32 to vector<144x6xf32>
    %14 = arith.maximumf %12, %13 : vector<144x6xf32>
    %15 = vector.extract_strided_slice %14 {offsets = [0, 0], sizes = [16, 6], strides = [1, 1]} : vector<144x6xf32> to vector<16x6xf32>
    %c0_6 = arith.constant 0 : index
    %c0_7 = arith.constant 0 : index
    %c0_8 = arith.constant 0 : index
    %16 = vector.load %arg3[%c0_6, %c0_7, %c0_8] : memref<9x6x16xf32, #tpu.memory_space<vmem>>, vector<1x6x16xf32>
    %17 = vector.shape_cast %16 : vector<1x6x16xf32> to vector<6x16xf32>
    %cst_9 = arith.constant dense<0.000000e+00> : vector<16x16xf32>
    %18 = tpu.matmul %15, %17, %cst_9 {dimension_numbers = #tpu.dot_dimension_numbers<[1], [0], [0], [1], [0, 0, 1, 1], [], []>} : vector<16x6xf32>, vector<6x16xf32>, vector<16x16xf32> -> vector<16x16xf32>
    %19 = vector.extract_strided_slice %14 {offsets = [16, 0], sizes = [16, 6], strides = [1, 1]} : vector<144x6xf32> to vector<16x6xf32>
    %c1 = arith.constant 1 : index
    %c0_10 = arith.constant 0 : index
    %c0_11 = arith.constant 0 : index
    %20 = vector.load %arg3[%c1, %c0_10, %c0_11] : memref<9x6x16xf32, #tpu.memory_space<vmem>>, vector<1x6x16xf32>
    %21 = vector.shape_cast %20 : vector<1x6x16xf32> to vector<6x16xf32>
    %cst_12 = arith.constant dense<0.000000e+00> : vector<16x16xf32>
    %22 = tpu.matmul %19, %21, %cst_12 {dimension_numbers = #tpu.dot_dimension_numbers<[1], [0], [0], [1], [0, 0, 1, 1], [], []>} : vector<16x6xf32>, vector<6x16xf32>, vector<16x16xf32> -> vector<16x16xf32>
    %23 = arith.addf %18, %22 : vector<16x16xf32>
    %24 = vector.extract_strided_slice %14 {offsets = [32, 0], sizes = [16, 6], strides = [1, 1]} : vector<144x6xf32> to vector<16x6xf32>
    %c2 = arith.constant 2 : index
    %c0_13 = arith.constant 0 : index
    %c0_14 = arith.constant 0 : index
    %25 = vector.load %arg3[%c2, %c0_13, %c0_14] : memref<9x6x16xf32, #tpu.memory_space<vmem>>, vector<1x6x16xf32>
    %26 = vector.shape_cast %25 : vector<1x6x16xf32> to vector<6x16xf32>
    %cst_15 = arith.constant dense<0.000000e+00> : vector<16x16xf32>
    %27 = tpu.matmul %24, %26, %cst_15 {dimension_numbers = #tpu.dot_dimension_numbers<[1], [0], [0], [1], [0, 0, 1, 1], [], []>} : vector<16x6xf32>, vector<6x16xf32>, vector<16x16xf32> -> vector<16x16xf32>
    %28 = arith.addf %23, %27 : vector<16x16xf32>
    %29 = vector.extract_strided_slice %14 {offsets = [48, 0], sizes = [16, 6], strides = [1, 1]} : vector<144x6xf32> to vector<16x6xf32>
    %c3 = arith.constant 3 : index
    %c0_16 = arith.constant 0 : index
    %c0_17 = arith.constant 0 : index
    %30 = vector.load %arg3[%c3, %c0_16, %c0_17] : memref<9x6x16xf32, #tpu.memory_space<vmem>>, vector<1x6x16xf32>
    %31 = vector.shape_cast %30 : vector<1x6x16xf32> to vector<6x16xf32>
    %cst_18 = arith.constant dense<0.000000e+00> : vector<16x16xf32>
    %32 = tpu.matmul %29, %31, %cst_18 {dimension_numbers = #tpu.dot_dimension_numbers<[1], [0], [0], [1], [0, 0, 1, 1], [], []>} : vector<16x6xf32>, vector<6x16xf32>, vector<16x16xf32> -> vector<16x16xf32>
    %33 = arith.addf %28, %32 : vector<16x16xf32>
    %34 = vector.extract_strided_slice %14 {offsets = [64, 0], sizes = [16, 6], strides = [1, 1]} : vector<144x6xf32> to vector<16x6xf32>
    %c4 = arith.constant 4 : index
    %c0_19 = arith.constant 0 : index
    %c0_20 = arith.constant 0 : index
    %35 = vector.load %arg3[%c4, %c0_19, %c0_20] : memref<9x6x16xf32, #tpu.memory_space<vmem>>, vector<1x6x16xf32>
    %36 = vector.shape_cast %35 : vector<1x6x16xf32> to vector<6x16xf32>
    %cst_21 = arith.constant dense<0.000000e+00> : vector<16x16xf32>
    %37 = tpu.matmul %34, %36, %cst_21 {dimension_numbers = #tpu.dot_dimension_numbers<[1], [0], [0], [1], [0, 0, 1, 1], [], []>} : vector<16x6xf32>, vector<6x16xf32>, vector<16x16xf32> -> vector<16x16xf32>
    %38 = arith.addf %33, %37 : vector<16x16xf32>
    %39 = vector.extract_strided_slice %14 {offsets = [80, 0], sizes = [16, 6], strides = [1, 1]} : vector<144x6xf32> to vector<16x6xf32>
    %c5 = arith.constant 5 : index
    %c0_22 = arith.constant 0 : index
    %c0_23 = arith.constant 0 : index
    %40 = vector.load %arg3[%c5, %c0_22, %c0_23] : memref<9x6x16xf32, #tpu.memory_space<vmem>>, vector<1x6x16xf32>
    %41 = vector.shape_cast %40 : vector<1x6x16xf32> to vector<6x16xf32>
    %cst_24 = arith.constant dense<0.000000e+00> : vector<16x16xf32>
    %42 = tpu.matmul %39, %41, %cst_24 {dimension_numbers = #tpu.dot_dimension_numbers<[1], [0], [0], [1], [0, 0, 1, 1], [], []>} : vector<16x6xf32>, vector<6x16xf32>, vector<16x16xf32> -> vector<16x16xf32>
    %43 = arith.addf %38, %42 : vector<16x16xf32>
    %44 = vector.extract_strided_slice %14 {offsets = [96, 0], sizes = [16, 6], strides = [1, 1]} : vector<144x6xf32> to vector<16x6xf32>
    %c6 = arith.constant 6 : index
    %c0_25 = arith.constant 0 : index
    %c0_26 = arith.constant 0 : index
    %45 = vector.load %arg3[%c6, %c0_25, %c0_26] : memref<9x6x16xf32, #tpu.memory_space<vmem>>, vector<1x6x16xf32>
    %46 = vector.shape_cast %45 : vector<1x6x16xf32> to vector<6x16xf32>
    %cst_27 = arith.constant dense<0.000000e+00> : vector<16x16xf32>
    %47 = tpu.matmul %44, %46, %cst_27 {dimension_numbers = #tpu.dot_dimension_numbers<[1], [0], [0], [1], [0, 0, 1, 1], [], []>} : vector<16x6xf32>, vector<6x16xf32>, vector<16x16xf32> -> vector<16x16xf32>
    %48 = arith.addf %43, %47 : vector<16x16xf32>
    %49 = vector.extract_strided_slice %14 {offsets = [112, 0], sizes = [16, 6], strides = [1, 1]} : vector<144x6xf32> to vector<16x6xf32>
    %c7 = arith.constant 7 : index
    %c0_28 = arith.constant 0 : index
    %c0_29 = arith.constant 0 : index
    %50 = vector.load %arg3[%c7, %c0_28, %c0_29] : memref<9x6x16xf32, #tpu.memory_space<vmem>>, vector<1x6x16xf32>
    %51 = vector.shape_cast %50 : vector<1x6x16xf32> to vector<6x16xf32>
    %cst_30 = arith.constant dense<0.000000e+00> : vector<16x16xf32>
    %52 = tpu.matmul %49, %51, %cst_30 {dimension_numbers = #tpu.dot_dimension_numbers<[1], [0], [0], [1], [0, 0, 1, 1], [], []>} : vector<16x6xf32>, vector<6x16xf32>, vector<16x16xf32> -> vector<16x16xf32>
    %53 = arith.addf %48, %52 : vector<16x16xf32>
    %54 = vector.extract_strided_slice %14 {offsets = [128, 0], sizes = [16, 6], strides = [1, 1]} : vector<144x6xf32> to vector<16x6xf32>
    %c8 = arith.constant 8 : index
    %c0_31 = arith.constant 0 : index
    %c0_32 = arith.constant 0 : index
    %55 = vector.load %arg3[%c8, %c0_31, %c0_32] : memref<9x6x16xf32, #tpu.memory_space<vmem>>, vector<1x6x16xf32>
    %56 = vector.shape_cast %55 : vector<1x6x16xf32> to vector<6x16xf32>
    %cst_33 = arith.constant dense<0.000000e+00> : vector<16x16xf32>
    %57 = tpu.matmul %54, %56, %cst_33 {dimension_numbers = #tpu.dot_dimension_numbers<[1], [0], [0], [1], [0, 0, 1, 1], [], []>} : vector<16x6xf32>, vector<6x16xf32>, vector<16x16xf32> -> vector<16x16xf32>
    %58 = arith.addf %53, %57 : vector<16x16xf32>
    %59 = vector.extract_strided_slice %58 {offsets = [0, 0], sizes = [4, 16], strides = [1, 1]} : vector<16x16xf32> to vector<4x16xf32>
    %60 = vector.extract_strided_slice %58 {offsets = [4, 0], sizes = [4, 16], strides = [1, 1]} : vector<16x16xf32> to vector<4x16xf32>
    %61 = arith.maximumf %59, %60 : vector<4x16xf32>
    %62 = vector.extract_strided_slice %58 {offsets = [8, 0], sizes = [4, 16], strides = [1, 1]} : vector<16x16xf32> to vector<4x16xf32>
    %63 = vector.extract_strided_slice %58 {offsets = [12, 0], sizes = [4, 16], strides = [1, 1]} : vector<16x16xf32> to vector<4x16xf32>
    %64 = arith.maximumf %62, %63 : vector<4x16xf32>
    %65 = arith.maximumf %61, %64 : vector<4x16xf32>
    %c0_34 = arith.constant 0 : index
    %c0_35 = arith.constant 0 : index
    %66 = vector.load %arg4[%c0_34, %c0_35] : memref<1x16xf32, #tpu.memory_space<vmem>>, vector<1x16xf32>
    %67 = vector.broadcast %66 : vector<1x16xf32> to vector<4x16xf32>
    %68 = arith.addf %65, %67 : vector<4x16xf32>
    %cst_36 = arith.constant 0.000000e+00 : f32
    %69 = vector.broadcast %cst_36 : f32 to vector<4x16xf32>
    %70 = arith.maximumf %68, %69 : vector<4x16xf32>
    %c0_37 = arith.constant 0 : index
    %c0_38 = arith.constant 0 : index
    %71 = vector.load %arg5[%c0_37, %c0_38] : memref<64x120xf32, #tpu.memory_space<vmem>>, vector<64x120xf32>
    %c0_39 = arith.constant 0 : index
    %c0_40 = arith.constant 0 : index
    %72 = vector.load %arg6[%c0_39, %c0_40] : memref<1x120xf32, #tpu.memory_space<vmem>>, vector<1x120xf32>
    %73 = vector.extract_strided_slice %70 {offsets = [0, 0], sizes = [1, 16], strides = [1, 1]} : vector<4x16xf32> to vector<1x16xf32>
    %74 = vector.extract_strided_slice %71 {offsets = [0, 0], sizes = [16, 120], strides = [1, 1]} : vector<64x120xf32> to vector<16x120xf32>
    %cst_41 = arith.constant dense<0.000000e+00> : vector<1x120xf32>
    %75 = tpu.matmul %73, %74, %cst_41 {dimension_numbers = #tpu.dot_dimension_numbers<[1], [0], [0], [1], [0, 0, 1, 1], [], []>} : vector<1x16xf32>, vector<16x120xf32>, vector<1x120xf32> -> vector<1x120xf32>
    %76 = arith.addf %72, %75 : vector<1x120xf32>
    %77 = vector.extract_strided_slice %70 {offsets = [1, 0], sizes = [1, 16], strides = [1, 1]} : vector<4x16xf32> to vector<1x16xf32>
    %78 = vector.extract_strided_slice %71 {offsets = [16, 0], sizes = [16, 120], strides = [1, 1]} : vector<64x120xf32> to vector<16x120xf32>
    %cst_42 = arith.constant dense<0.000000e+00> : vector<1x120xf32>
    %79 = tpu.matmul %77, %78, %cst_42 {dimension_numbers = #tpu.dot_dimension_numbers<[1], [0], [0], [1], [0, 0, 1, 1], [], []>} : vector<1x16xf32>, vector<16x120xf32>, vector<1x120xf32> -> vector<1x120xf32>
    %80 = arith.addf %76, %79 : vector<1x120xf32>
    %81 = vector.extract_strided_slice %70 {offsets = [2, 0], sizes = [1, 16], strides = [1, 1]} : vector<4x16xf32> to vector<1x16xf32>
    %82 = vector.extract_strided_slice %71 {offsets = [32, 0], sizes = [16, 120], strides = [1, 1]} : vector<64x120xf32> to vector<16x120xf32>
    %cst_43 = arith.constant dense<0.000000e+00> : vector<1x120xf32>
    %83 = tpu.matmul %81, %82, %cst_43 {dimension_numbers = #tpu.dot_dimension_numbers<[1], [0], [0], [1], [0, 0, 1, 1], [], []>} : vector<1x16xf32>, vector<16x120xf32>, vector<1x120xf32> -> vector<1x120xf32>
    %84 = arith.addf %80, %83 : vector<1x120xf32>
    %85 = vector.extract_strided_slice %70 {offsets = [3, 0], sizes = [1, 16], strides = [1, 1]} : vector<4x16xf32> to vector<1x16xf32>
    %86 = vector.extract_strided_slice %71 {offsets = [48, 0], sizes = [16, 120], strides = [1, 1]} : vector<64x120xf32> to vector<16x120xf32>
    %cst_44 = arith.constant dense<0.000000e+00> : vector<1x120xf32>
    %87 = tpu.matmul %85, %86, %cst_44 {dimension_numbers = #tpu.dot_dimension_numbers<[1], [0], [0], [1], [0, 0, 1, 1], [], []>} : vector<1x16xf32>, vector<16x120xf32>, vector<1x120xf32> -> vector<1x120xf32>
    %88 = arith.addf %84, %87 : vector<1x120xf32>
    %cst_45 = arith.constant 0.000000e+00 : f32
    %89 = vector.broadcast %cst_45 : f32 to vector<1x120xf32>
    %90 = arith.maximumf %88, %89 : vector<1x120xf32>
    %c0_46 = arith.constant 0 : index
    %c0_47 = arith.constant 0 : index
    %91 = vector.load %arg7[%c0_46, %c0_47] : memref<120x84xf32, #tpu.memory_space<vmem>>, vector<120x84xf32>
    %cst_48 = arith.constant dense<0.000000e+00> : vector<1x84xf32>
    %92 = tpu.matmul %90, %91, %cst_48 {dimension_numbers = #tpu.dot_dimension_numbers<[1], [0], [0], [1], [0, 0, 1, 1], [], []>} : vector<1x120xf32>, vector<120x84xf32>, vector<1x84xf32> -> vector<1x84xf32>
    %c0_49 = arith.constant 0 : index
    %c0_50 = arith.constant 0 : index
    %93 = vector.load %arg8[%c0_49, %c0_50] : memref<1x84xf32, #tpu.memory_space<vmem>>, vector<1x84xf32>
    %94 = arith.addf %92, %93 : vector<1x84xf32>
    %cst_51 = arith.constant 0.000000e+00 : f32
    %95 = vector.broadcast %cst_51 : f32 to vector<1x84xf32>
    %96 = arith.maximumf %94, %95 : vector<1x84xf32>
    %c0_52 = arith.constant 0 : index
    %c0_53 = arith.constant 0 : index
    %97 = vector.load %arg9[%c0_52, %c0_53] : memref<84x3xf32, #tpu.memory_space<vmem>>, vector<84x3xf32>
    %cst_54 = arith.constant dense<0.000000e+00> : vector<1x3xf32>
    %98 = tpu.matmul %96, %97, %cst_54 {dimension_numbers = #tpu.dot_dimension_numbers<[1], [0], [0], [1], [0, 0, 1, 1], [], []>} : vector<1x84xf32>, vector<84x3xf32>, vector<1x3xf32> -> vector<1x3xf32>
    %c0_55 = arith.constant 0 : index
    %c0_56 = arith.constant 0 : index
    %99 = vector.load %arg10[%c0_55, %c0_56] : memref<1x3xf32, #tpu.memory_space<vmem>>, vector<1x3xf32>
    %100 = arith.addf %98, %99 : vector<1x3xf32>
    %c0_57 = arith.constant 0 : index
    %c0_58 = arith.constant 0 : index
    %101 = vector.load %arg11[%c0_57, %c0_58] : memref<1x3xf32, #tpu.memory_space<vmem>>, vector<1x3xf32>
    tpu.vector_store %arg11[%c0_57, %c0_58], %100 {strides = array<i32>} : memref<1x3xf32, #tpu.memory_space<vmem>>, vector<1x3xf32>,
    return
  }
}

</mosaic_0001>

<llo_original>
// kernel: lenet_forward.1
$region0: #{lenet_forward.1}
  #allocation0 [shape = 'u32[]', space=smem, size = 0x4, offset = 0x4, fixed_abs, tag = 'smem constant byte address 0x4 - core index']
  #allocation1 [shape = 'u32[144,128]{1,0:T(1,128)}', space=vmem, size = 0x12000, scoped, tag = 'internal scratch']
  %s0 = inlined_call_operand.vmem [shape: f32[576,75], index: 0, kind: input, shape index: {}]
  %s1 = inlined_call_operand.vmem [shape: f32[75,6], index: 1, kind: input, shape index: {}]
  %s2 = inlined_call_operand.vmem [shape: f32[1,6], index: 2, kind: input, shape index: {}]
  %s3 = inlined_call_operand.vmem [shape: f32[9,6,16], index: 3, kind: input, shape index: {}]
  %s4 = inlined_call_operand.vmem [shape: f32[1,16], index: 4, kind: input, shape index: {}]
  %s5 = inlined_call_operand.vmem [shape: f32[64,120], index: 5, kind: input, shape index: {}]
  %s6 = inlined_call_operand.vmem [shape: f32[1,120], index: 6, kind: input, shape index: {}]
  %s7 = inlined_call_operand.vmem [shape: f32[120,84], index: 7, kind: input, shape index: {}]
  %s8 = inlined_call_operand.vmem [shape: f32[1,84], index: 8, kind: input, shape index: {}]
  %s9 = inlined_call_operand.vmem [shape: f32[84,3], index: 9, kind: input, shape index: {}]
  %s10 = inlined_call_operand.vmem [shape: f32[1,3], index: 10, kind: input, shape index: {}]
  %s11 = inlined_call_operand.hbm [shape: f32[1,3], index: 11, kind: output, shape index: {}]
  %s12 = sld [smem:[#allocation0]]
  $region54: #{lenet_forward.1} parent=0
    _
  %s14 = ssub.s32 1, %s12
  %s15 = scalar_select 0, %s14, %s12
  $region1: #{lenet_forward.1} parent=0
    #allocation2 [shape = 'u8[512]{0}', space=vmem, size = 0x400, scoped, tag = 'output window, operand 0, single buffered']
    #allocation3 [shape = 's32[1]{0}', space=sflag, size = 0x4, scoped, tag = 'scoped memory for lenet_forward.1']
    %16 = vsyncpa [#allocation3], 0
    // Predicated region
    $region2: #{lenet_forward.1} parent=1 // pred_check
      _
    $region3: #{lenet_forward.1} parent=1 // pred_check_branch
      %18 = sbr.rel (0) target = $region5
    $region4: #{lenet_forward.1} parent=1 // pred_region
      _
    $region5: #{lenet_forward.1} parent=1 // pred_fallthru
      _
    // Predicated region
    $region6: #{lenet_forward.1} parent=1 // pred_check
      _
    $region7: #{lenet_forward.1} parent=1 // pred_check_branch
      %20 = sbr.rel (0) target = $region9
    $region8: #{lenet_forward.1} parent=1 // pred_region
      _
    $region9: #{lenet_forward.1} parent=1 // pred_fallthru
      _
    // Predicated region
    $region10: #{lenet_forward.1} parent=1 // pred_check
      _
    $region11: #{lenet_forward.1} parent=1 // pred_check_branch
      %22 = sbr.rel (0) target = $region13
    $region12: #{lenet_forward.1} parent=1 // pred_region
      _
    $region13: #{lenet_forward.1} parent=1 // pred_fallthru
      _
    // Predicated region
    $region14: #{lenet_forward.1} parent=1 // pred_check
      _
    $region15: #{lenet_forward.1} parent=1 // pred_check_branch
      %24 = sbr.rel (0) target = $region17
    $region16: #{lenet_forward.1} parent=1 // pred_region
      _
    $region17: #{lenet_forward.1} parent=1 // pred_fallthru
      _
    // Predicated region
    $region18: #{lenet_forward.1} parent=1 // pred_check
      _
    $region19: #{lenet_forward.1} parent=1 // pred_check_branch
      %26 = sbr.rel (0) target = $region21
    $region20: #{lenet_forward.1} parent=1 // pred_region
      _
    $region21: #{lenet_forward.1} parent=1 // pred_fallthru
      _
    // Predicated region
    $region22: #{lenet_forward.1} parent=1 // pred_check
      _
    $region23: #{lenet_forward.1} parent=1 // pred_check_branch
      %28 = sbr.rel (0) target = $region25
    $region24: #{lenet_forward.1} parent=1 // pred_region
      _
    $region25: #{lenet_forward.1} parent=1 // pred_fallthru
      _
    // Predicated region
    $region26: #{lenet_forward.1} parent=1 // pred_check
      _
    $region27: #{lenet_forward.1} parent=1 // pred_check_branch
      %30 = sbr.rel (0) target = $region29
    $region28: #{lenet_forward.1} parent=1 // pred_region
      _
    $region29: #{lenet_forward.1} parent=1 // pred_fallthru
      _
    // Predicated region
    $region30: #{lenet_forward.1} parent=1 // pred_check
      _
    $region31: #{lenet_forward.1} parent=1 // pred_check_branch
      %32 = sbr.rel (0) target = $region33
    $region32: #{lenet_forward.1} parent=1 // pred_region
      _
    $region33: #{lenet_forward.1} parent=1 // pred_fallthru
      _
    // Predicated region
    $region34: #{lenet_forward.1} parent=1 // pred_check
      _
    $region35: #{lenet_forward.1} parent=1 // pred_check_branch
      %34 = sbr.rel (0) target = $region37
    $region36: #{lenet_forward.1} parent=1 // pred_region
      _
    $region37: #{lenet_forward.1} parent=1 // pred_fallthru
      _
    // Predicated region
    $region38: #{lenet_forward.1} parent=1 // pred_check
      _
    $region39: #{lenet_forward.1} parent=1 // pred_check_branch
      %36 = sbr.rel (0) target = $region41
    $region40: #{lenet_forward.1} parent=1 // pred_region
      _
    $region41: #{lenet_forward.1} parent=1 // pred_fallthru
      _
    // Predicated region
    $region42: #{lenet_forward.1} parent=1 // pred_check
      _
    $region43: #{lenet_forward.1} parent=1 // pred_check_branch
      %38 = sbr.rel (0) target = $region45
    $region44: #{lenet_forward.1} parent=1 // pred_region
      _
    $region45: #{lenet_forward.1} parent=1 // pred_fallthru
      _
    %v39 = vld [vmem:[%s0] sm:$0xff]
    %v40 = vld [vmem:[%s0 + $0x8] sm:$0xff]
    %v41 = vld [vmem:[%s0 + $0x10] sm:$0xff]
    %v42 = vld [vmem:[%s0 + $0x18] sm:$0xff]
    %v43 = vld [vmem:[%s0 + $0x20] sm:$0xff]
    %v44 = vld [vmem:[%s0 + $0x28] sm:$0xff]
    %v45 = vld [vmem:[%s0 + $0x30] sm:$0xff]
    %v46 = vld [vmem:[%s0 + $0x38] sm:$0xff]
    %v47 = vld [vmem:[%s0 + $0x40] sm:$0xff]
    %v48 = vld [vmem:[%s0 + $0x48] sm:$0xff]
    %v49 = vld [vmem:[%s0 + $0x50] sm:$0xff]
    %v50 = vld [vmem:[%s0 + $0x58] sm:$0xff]
    %v51 = vld [vmem:[%s0 + $0x60] sm:$0xff]
    %v52 = vld [vmem:[%s0 + $0x68] sm:$0xff]
    %v53 = vld [vmem:[%s0 + $0x70] sm:$0xff]
    %v54 = vld [vmem:[%s0 + $0x78] sm:$0xff]
    %v55 = vld [vmem:[%s0 + $0x80] sm:$0xff]
    %v56 = vld [vmem:[%s0 + $0x88] sm:$0xff]
    %v57 = vld [vmem:[%s0 + $0x90] sm:$0xff]
    %v58 = vld [vmem:[%s0 + $0x98] sm:$0xff]
    %v59 = vld [vmem:[%s0 + $0xa0] sm:$0xff]
    %v60 = vld [vmem:[%s0 + $0xa8] sm:$0xff]
    %v61 = vld [vmem:[%s0 + $0xb0] sm:$0xff]
    %v62 = vld [vmem:[%s0 + $0xb8] sm:$0xff]
    %v63 = vld [vmem:[%s0 + $0xc0] sm:$0xff]
    %v64 = vld [vmem:[%s0 + $0xc8] sm:$0xff]
    %v65 = vld [vmem:[%s0 + $0xd0] sm:$0xff]
    %v66 = vld [vmem:[%s0 + $0xd8] sm:$0xff]
    %v67 = vld [vmem:[%s0 + $0xe0] sm:$0xff]
    %v68 = vld [vmem:[%s0 + $0xe8] sm:$0xff]
    %v69 = vld [vmem:[%s0 + $0xf0] sm:$0xff]
    %v70 = vld [vmem:[%s0 + $0xf8] sm:$0xff]
    %v71 = vld [vmem:[%s0 + $0x100] sm:$0xff]
    %v72 = vld [vmem:[%s0 + $0x108] sm:$0xff]
    %v73 = vld [vmem:[%s0 + $0x110] sm:$0xff]
    %v74 = vld [vmem:[%s0 + $0x118] sm:$0xff]
    %v75 = vld [vmem:[%s0 + $0x120] sm:$0xff]
    %v76 = vld [vmem:[%s0 + $0x128] sm:$0xff]
    %v77 = vld [vmem:[%s0 + $0x130] sm:$0xff]
    %v78 = vld [vmem:[%s0 + $0x138] sm:$0xff]
    %v79 = vld [vmem:[%s0 + $0x140] sm:$0xff]
    %v80 = vld [vmem:[%s0 + $0x148] sm:$0xff]
    %v81 = vld [vmem:[%s0 + $0x150] sm:$0xff]
    %v82 = vld [vmem:[%s0 + $0x158] sm:$0xff]
    %v83 = vld [vmem:[%s0 + $0x160] sm:$0xff]
    %v84 = vld [vmem:[%s0 + $0x168] sm:$0xff]
    %v85 = vld [vmem:[%s0 + $0x170] sm:$0xff]
    %v86 = vld [vmem:[%s0 + $0x178] sm:$0xff]
    %v87 = vld [vmem:[%s0 + $0x180] sm:$0xff]
    %v88 = vld [vmem:[%s0 + $0x188] sm:$0xff]
    %v89 = vld [vmem:[%s0 + $0x190] sm:$0xff]
    %v90 = vld [vmem:[%s0 + $0x198] sm:$0xff]
    %v91 = vld [vmem:[%s0 + $0x1a0] sm:$0xff]
    %v92 = vld [vmem:[%s0 + $0x1a8] sm:$0xff]
    %v93 = vld [vmem:[%s0 + $0x1b0] sm:$0xff]
    %v94 = vld [vmem:[%s0 + $0x1b8] sm:$0xff]
    %v95 = vld [vmem:[%s0 + $0x1c0] sm:$0xff]
    %v96 = vld [vmem:[%s0 + $0x1c8] sm:$0xff]
    %v97 = vld [vmem:[%s0 + $0x1d0] sm:$0xff]
    %v98 = vld [vmem:[%s0 + $0x1d8] sm:$0xff]
    %v99 = vld [vmem:[%s0 + $0x1e0] sm:$0xff]
    %v100 = vld [vmem:[%s0 + $0x1e8] sm:$0xff]
    %v101 = vld [vmem:[%s0 + $0x1f0] sm:$0xff]
    %v102 = vld [vmem:[%s0 + $0x1f8] sm:$0xff]
    %v103 = vld [vmem:[%s0 + $0x200] sm:$0xff]
    %v104 = vld [vmem:[%s0 + $0x208] sm:$0xff]
    %v105 = vld [vmem:[%s0 + $0x210] sm:$0xff]
    %v106 = vld [vmem:[%s0 + $0x218] sm:$0xff]
    %v107 = vld [vmem:[%s0 + $0x220] sm:$0xff]
    %v108 = vld [vmem:[%s0 + $0x228] sm:$0xff]
    %v109 = vld [vmem:[%s0 + $0x230] sm:$0xff]
    %v110 = vld [vmem:[%s0 + $0x238] sm:$0xff]
    %v111 = vld [vmem:[%s1] sm:$0xff]
    %v112 = vld [vmem:[%s1 + $0x8] sm:$0xff]
    %v113 = vld [vmem:[%s1 + $0x10] sm:$0xff]
    %v114 = vld [vmem:[%s1 + $0x18] sm:$0xff]
    %v115 = vld [vmem:[%s1 + $0x20] sm:$0xff]
    %v116 = vld [vmem:[%s1 + $0x28] sm:$0xff]
    %v117 = vld [vmem:[%s1 + $0x30] sm:$0xff]
    %v118 = vld [vmem:[%s1 + $0x38] sm:$0xff]
    %v119 = vld [vmem:[%s1 + $0x40] sm:$0xff]
    %v120 = vld [vmem:[%s1 + $0x48] sm:$0x7]
    %vm121 = vcmask 613376
    %v123 = vsel %vm121, %v39, 0
    %v126 = vsel %vm121, %v40, 0
    %v129 = vsel %vm121, %v41, 0
    %v132 = vsel %vm121, %v42, 0
    %v135 = vsel %vm121, %v43, 0
    %v138 = vsel %vm121, %v44, 0
    %v141 = vsel %vm121, %v45, 0
    %v144 = vsel %vm121, %v46, 0
    %v147 = vsel %vm121, %v47, 0
    %v150 = vsel %vm121, %v48, 0
    %v153 = vsel %vm121, %v49, 0
    %v156 = vsel %vm121, %v50, 0
    %v159 = vsel %vm121, %v51, 0
    %v162 = vsel %vm121, %v52, 0
    %v165 = vsel %vm121, %v53, 0
    %v168 = vsel %vm121, %v54, 0
    %v171 = vsel %vm121, %v55, 0
    %v174 = vsel %vm121, %v56, 0
    %v177 = vsel %vm121, %v57, 0
    %v180 = vsel %vm121, %v58, 0
    %v183 = vsel %vm121, %v59, 0
    %v186 = vsel %vm121, %v60, 0
    %v189 = vsel %vm121, %v61, 0
    %v192 = vsel %vm121, %v62, 0
    %v195 = vsel %vm121, %v63, 0
    %v198 = vsel %vm121, %v64, 0
    %v201 = vsel %vm121, %v65, 0
    %v204 = vsel %vm121, %v66, 0
    %v207 = vsel %vm121, %v67, 0
    %v210 = vsel %vm121, %v68, 0
    %v213 = vsel %vm121, %v69, 0
    %v216 = vsel %vm121, %v70, 0
    %v219 = vsel %vm121, %v71, 0
    %v222 = vsel %vm121, %v72, 0
    %v225 = vsel %vm121, %v73, 0
    %v228 = vsel %vm121, %v74, 0
    %v231 = vsel %vm121, %v75, 0
    %v234 = vsel %vm121, %v76, 0
    %v237 = vsel %vm121, %v77, 0
    %v240 = vsel %vm121, %v78, 0
    %v243 = vsel %vm121, %v79, 0
    %v246 = vsel %vm121, %v80, 0
    %v249 = vsel %vm121, %v81, 0
    %v252 = vsel %vm121, %v82, 0
    %v255 = vsel %vm121, %v83, 0
    %v258 = vsel %vm121, %v84, 0
    %v261 = vsel %vm121, %v85, 0
    %v264 = vsel %vm121, %v86, 0
    %v267 = vsel %vm121, %v87, 0
    %v270 = vsel %vm121, %v88, 0
    %v273 = vsel %vm121, %v89, 0
    %v276 = vsel %vm121, %v90, 0
    %v279 = vsel %vm121, %v91, 0
    %v282 = vsel %vm121, %v92, 0
    %v285 = vsel %vm121, %v93, 0
    %v288 = vsel %vm121, %v94, 0
    %v291 = vsel %vm121, %v95, 0
    %v294 = vsel %vm121, %v96, 0
    %v297 = vsel %vm121, %v97, 0
    %v300 = vsel %vm121, %v98, 0
    %v303 = vsel %vm121, %v99, 0
    %v306 = vsel %vm121, %v100, 0
    %v309 = vsel %vm121, %v101, 0
    %v312 = vsel %vm121, %v102, 0
    %v315 = vsel %vm121, %v103, 0
    %v318 = vsel %vm121, %v104, 0
    %v321 = vsel %vm121, %v105, 0
    %v324 = vsel %vm121, %v106, 0
    %v327 = vsel %vm121, %v107, 0
    %v330 = vsel %vm121, %v108, 0
    %v333 = vsel %vm121, %v109, 0
    %v336 = vsel %vm121, %v110, 0
    %vm338 = vcmask 1042432
    %v340 = vsel %vm338, %v120, 0
    %342 = vmatprep.subr.mxu0 0.0
    %343 = vmatpush1.msra.mxu0 %v111
    %344 = vmatprep.subr.mxu0 0.0
    %345 = vmatpush1.msra.mxu0 %v112
    %346 = vmatprep.subr.mxu0 0.0
    %347 = vmatpush1.msra.mxu0 %v113
    %348 = vmatprep.subr.mxu0 0.0
    %349 = vmatpush1.msra.mxu0 %v114
    %350 = vmatprep.subr.mxu0 0.0
    %351 = vmatpush1.msra.mxu0 %v115
    %352 = vmatprep.subr.mxu0 0.0
    %353 = vmatpush1.msra.mxu0 %v116
    %354 = vmatprep.subr.mxu0 0.0
    %355 = vmatpush1.msra.mxu0 %v117
    %356 = vmatprep.subr.mxu0 0.0
    %357 = vmatpush1.msra.mxu0 %v118
    %358 = vmatprep.subr.mxu0 0.0
    %359 = vmatpush1.msra.mxu0 %v119
    %360 = vmatprep.subr.mxu0 0.0
    %361 = vmatpush1.msra.mxu0 %v340
    %362 = vmatprep.subr.mxu0 0.0
    %363 = vmatpush1.msra.mxu0 0.0
    %364 = vmatprep.subr.mxu0 0.0
    %365 = vmatpush1.msra.mxu0 0.0
    %366 = vmatprep.subr.mxu0 0.0
    %367 = vmatpush1.msra.mxu0 0.0
    %368 = vmatprep.subr.mxu0 0.0
    %369 = vmatpush1.msra.mxu0 0.0
    %370 = vmatprep.subr.mxu0 0.0
    %371 = vmatpush1.msra.mxu0 0.0
    %372 = vmatprep.subr.mxu0 0.0
    %373 = vmatpush1.msra.mxu0 0.0
    %374 = vmatprep.subr.mxu0 0.0
    %375 = vmatpush1.msra.mxu0 0.0
    %376 = vmatprep.subr.mxu0 0.0
    %377 = vmatpush1.msra.mxu0 0.0
    %378 = vmatprep.subr.mxu0 0.0
    %379 = vmatpush1.msra.mxu0 0.0
    %380 = vmatprep.subr.mxu0 0.0
    %381 = vmatpush1.msra.mxu0 0.0
    %382 = vmatprep.subr.mxu0 0.0
    %383 = vmatpush1.msra.mxu0 0.0
    %384 = vmatprep.subr.mxu0 0.0
    %385 = vmatpush1.msra.mxu0 0.0
    %386 = vmatprep.subr.mxu0 0.0
    %387 = vmatpush1.msra.mxu0 0.0
    %388 = vmatprep.subr.mxu0 0.0
    %389 = vmatpush1.msra.mxu0 0.0
    %390 = vmatprep.subr.mxu0 0.0
    %391 = vmatpush1.msra.mxu0 0.0
    %392 = vmatprep.subr.mxu0 0.0
    %393 = vmatpush1.msra.mxu0 0.0
    %394 = vmatprep.subr.mxu0 0.0
    %395 = vmatpush1.msra.mxu0 0.0
    %396 = vmatprep.subr.mxu0 0.0
    %397 = vmatpush1.msra.mxu0 0.0
    %398 = vmatprep.subr.mxu0 0.0
    %399 = vmatpush1.msra.mxu0 0.0
    %400 = vmatprep.subr.mxu0 0.0
    %401 = vmatpush1.msra.mxu0 0.0
    %402 = vmatprep.subr.mxu0 0.0
    %403 = vmatpush1.msra.mxu0 0.0
    %404 = vmatprep.subr.mxu0 0.0
    %405 = vmatpush1.msra.mxu0 0.0
    %406 = vmatprep.mubr.f32.mxu0 0.0
    %407 = vmatmul.mubr.f32.gmra.mrb[0].mxu0 %v123
    %v408 = vpop.f32.mrb[0].mxu0
    %v409 = vadd.f32 0.0, %v408
    %v410 = vpop.f32.mrb[0].mxu0
    %411 = vmatprep.mubr.f32.mxu0 0.0
    %412 = vmatmul.mubr.f32.gmra.mrb[0].mxu0 %v126
    %v413 = vpop.f32.mrb[0].mxu0
    %v414 = vadd.f32 0.0, %v413
    %v415 = vpop.f32.mrb[0].mxu0
    %416 = vmatprep.mubr.f32.mxu0 0.0
    %417 = vmatmul.mubr.f32.gmra.mrb[0].mxu0 %v129
    %v418 = vpop.f32.mrb[0].mxu0
    %v419 = vadd.f32 0.0, %v418
    %v420 = vpop.f32.mrb[0].mxu0
    %421 = vmatprep.mubr.f32.mxu0 0.0
    %422 = vmatmul.mubr.f32.gmra.mrb[0].mxu0 %v132
    %v423 = vpop.f32.mrb[0].mxu0
    %v424 = vadd.f32 0.0, %v423
    %v425 = vpop.f32.mrb[0].mxu0
    %426 = vmatprep.mubr.f32.mxu0 0.0
    %427 = vmatmul.mubr.f32.gmra.mrb[0].mxu0 %v135
    %v428 = vpop.f32.mrb[0].mxu0
    %v429 = vadd.f32 0.0, %v428
    %v430 = vpop.f32.mrb[0].mxu0
    %431 = vmatprep.mubr.f32.mxu0 0.0
    %432 = vmatmul.mubr.f32.gmra.mrb[0].mxu0 %v138
    %v433 = vpop.f32.mrb[0].mxu0
    %v434 = vadd.f32 0.0, %v433
    %v435 = vpop.f32.mrb[0].mxu0
    %436 = vmatprep.mubr.f32.mxu0 0.0
    %437 = vmatmul.mubr.f32.gmra.mrb[0].mxu0 %v141
    %v438 = vpop.f32.mrb[0].mxu0
    %v439 = vadd.f32 0.0, %v438
    %v440 = vpop.f32.mrb[0].mxu0
    %441 = vmatprep.mubr.f32.mxu0 0.0
    %442 = vmatmul.mubr.f32.gmra.mrb[0].mxu0 %v144
    %v443 = vpop.f32.mrb[0].mxu0
    %v444 = vadd.f32 0.0, %v443
    %v445 = vpop.f32.mrb[0].mxu0
    %446 = vmatprep.mubr.f32.mxu0 0.0
    %447 = vmatmul.mubr.f32.gmra.mrb[0].mxu0 %v147
    %v448 = vpop.f32.mrb[0].mxu0
    %v449 = vadd.f32 0.0, %v448
    %v450 = vpop.f32.mrb[0].mxu0
    %451 = vmatprep.mubr.f32.mxu0 0.0
    %452 = vmatmul.mubr.f32.gmra.mrb[0].mxu0 %v150
    %v453 = vpop.f32.mrb[0].mxu0
    %v454 = vadd.f32 0.0, %v453
    %v455 = vpop.f32.mrb[0].mxu0
    %456 = vmatprep.mubr.f32.mxu0 0.0
    %457 = vmatmul.mubr.f32.gmra.mrb[0].mxu0 %v153
    %v458 = vpop.f32.mrb[0].mxu0
    %v459 = vadd.f32 0.0, %v458
    %v460 = vpop.f32.mrb[0].mxu0
    %461 = vmatprep.mubr.f32.mxu0 0.0
    %462 = vmatmul.mubr.f32.gmra.mrb[0].mxu0 %v156
    %v463 = vpop.f32.mrb[0].mxu0
    %v464 = vadd.f32 0.0, %v463
    %v465 = vpop.f32.mrb[0].mxu0
    %466 = vmatprep.mubr.f32.mxu0 0.0
    %467 = vmatmul.mubr.f32.gmra.mrb[0].mxu0 %v159
    %v468 = vpop.f32.mrb[0].mxu0
    %v469 = vadd.f32 0.0, %v468
    %v470 = vpop.f32.mrb[0].mxu0
    %471 = vmatprep.mubr.f32.mxu0 0.0
    %472 = vmatmul.mubr.f32.gmra.mrb[0].mxu0 %v162
    %v473 = vpop.f32.mrb[0].mxu0
    %v474 = vadd.f32 0.0, %v473
    %v475 = vpop.f32.mrb[0].mxu0
    %476 = vmatprep.mubr.f32.mxu0 0.0
    %477 = vmatmul.mubr.f32.gmra.mrb[0].mxu0 %v165
    %v478 = vpop.f32.mrb[0].mxu0
    %v479 = vadd.f32 0.0, %v478
    %v480 = vpop.f32.mrb[0].mxu0
    %481 = vmatprep.mubr.f32.mxu0 0.0
    %482 = vmatmul.mubr.f32.gmra.mrb[0].mxu0 %v168
    %v483 = vpop.f32.mrb[0].mxu0
    %v484 = vadd.f32 0.0, %v483
    %v485 = vpop.f32.mrb[0].mxu0
    %486 = vmatprep.mubr.f32.mxu0 0.0
    %487 = vmatmul.mubr.f32.gmra.mrb[0].mxu0 %v171
    %v488 = vpop.f32.mrb[0].mxu0
    %v489 = vadd.f32 0.0, %v488
    %v490 = vpop.f32.mrb[0].mxu0
    %491 = vmatprep.mubr.f32.mxu0 0.0
    %492 = vmatmul.mubr.f32.gmra.mrb[0].mxu0 %v174
    %v493 = vpop.f32.mrb[0].mxu0
    %v494 = vadd.f32 0.0, %v493
    %v495 = vpop.f32.mrb[0].mxu0
    %496 = vmatprep.mubr.f32.mxu0 0.0
    %497 = vmatmul.mubr.f32.gmra.mrb[0].mxu0 %v177
    %v498 = vpop.f32.mrb[0].mxu0
    %v499 = vadd.f32 0.0, %v498
    %v500 = vpop.f32.mrb[0].mxu0
    %501 = vmatprep.mubr.f32.mxu0 0.0
    %502 = vmatmul.mubr.f32.gmra.mrb[0].mxu0 %v180
    %v503 = vpop.f32.mrb[0].mxu0
    %v504 = vadd.f32 0.0, %v503
    %v505 = vpop.f32.mrb[0].mxu0
    %506 = vmatprep.mubr.f32.mxu0 0.0
    %507 = vmatmul.mubr.f32.gmra.mrb[0].mxu0 %v183
    %v508 = vpop.f32.mrb[0].mxu0
    %v509 = vadd.f32 0.0, %v508
    %v510 = vpop.f32.mrb[0].mxu0
    %511 = vmatprep.mubr.f32.mxu0 0.0
    %512 = vmatmul.mubr.f32.gmra.mrb[0].mxu0 %v186
    %v513 = vpop.f32.mrb[0].mxu0
    %v514 = vadd.f32 0.0, %v513
    %v515 = vpop.f32.mrb[0].mxu0
    %516 = vmatprep.mubr.f32.mxu0 0.0
    %517 = vmatmul.mubr.f32.gmra.mrb[0].mxu0 %v189
    %v518 = vpop.f32.mrb[0].mxu0
    %v519 = vadd.f32 0.0, %v518
    %v520 = vpop.f32.mrb[0].mxu0
    %521 = vmatprep.mubr.f32.mxu0 0.0
    %522 = vmatmul.mubr.f32.gmra.mrb[0].mxu0 %v192
    %v523 = vpop.f32.mrb[0].mxu0
    %v524 = vadd.f32 0.0, %v523
    %v525 = vpop.f32.mrb[0].mxu0
    %526 = vmatprep.mubr.f32.mxu0 0.0
    %527 = vmatmul.mubr.f32.gmra.mrb[0].mxu0 %v195
    %v528 = vpop.f32.mrb[0].mxu0
    %v529 = vadd.f32 0.0, %v528
    %v530 = vpop.f32.mrb[0].mxu0
    %531 = vmatprep.mubr.f32.mxu0 0.0
    %532 = vmatmul.mubr.f32.gmra.mrb[0].mxu0 %v198
    %v533 = vpop.f32.mrb[0].mxu0
    %v534 = vadd.f32 0.0, %v533
    %v535 = vpop.f32.mrb[0].mxu0
    %536 = vmatprep.mubr.f32.mxu0 0.0
    %537 = vmatmul.mubr.f32.gmra.mrb[0].mxu0 %v201
    %v538 = vpop.f32.mrb[0].mxu0
    %v539 = vadd.f32 0.0, %v538
    %v540 = vpop.f32.mrb[0].mxu0
    %541 = vmatprep.mubr.f32.mxu0 0.0
    %542 = vmatmul.mubr.f32.gmra.mrb[0].mxu0 %v204
    %v543 = vpop.f32.mrb[0].mxu0
    %v544 = vadd.f32 0.0, %v543
    %v545 = vpop.f32.mrb[0].mxu0
    %546 = vmatprep.mubr.f32.mxu0 0.0
    %547 = vmatmul.mubr.f32.gmra.mrb[0].mxu0 %v207
    %v548 = vpop.f32.mrb[0].mxu0
    %v549 = vadd.f32 0.0, %v548
    %v550 = vpop.f32.mrb[0].mxu0
    %551 = vmatprep.mubr.f32.mxu0 0.0
    %552 = vmatmul.mubr.f32.gmra.mrb[0].mxu0 %v210
    %v553 = vpop.f32.mrb[0].mxu0
    %v554 = vadd.f32 0.0, %v553
    %v555 = vpop.f32.mrb[0].mxu0
    %556 = vmatprep.mubr.f32.mxu0 0.0
    %557 = vmatmul.mubr.f32.gmra.mrb[0].mxu0 %v213
    %v558 = vpop.f32.mrb[0].mxu0
    %v559 = vadd.f32 0.0, %v558
    %v560 = vpop.f32.mrb[0].mxu0
    %561 = vmatprep.mubr.f32.mxu0 0.0
    %562 = vmatmul.mubr.f32.gmra.mrb[0].mxu0 %v216
    %v563 = vpop.f32.mrb[0].mxu0
    %v564 = vadd.f32 0.0, %v563
    %v565 = vpop.f32.mrb[0].mxu0
    %566 = vmatprep.mubr.f32.mxu0 0.0
    %567 = vmatmul.mubr.f32.gmra.mrb[0].mxu0 %v219
    %v568 = vpop.f32.mrb[0].mxu0
    %v569 = vadd.f32 0.0, %v568
    %v570 = vpop.f32.mrb[0].mxu0
    %571 = vmatprep.mubr.f32.mxu0 0.0
    %572 = vmatmul.mubr.f32.gmra.mrb[0].mxu0 %v222
    %v573 = vpop.f32.mrb[0].mxu0
    %v574 = vadd.f32 0.0, %v573
    %v575 = vpop.f32.mrb[0].mxu0
    %576 = vmatprep.mubr.f32.mxu0 0.0
    %577 = vmatmul.mubr.f32.gmra.mrb[0].mxu0 %v225
    %v578 = vpop.f32.mrb[0].mxu0
    %v579 = vadd.f32 0.0, %v578
    %v580 = vpop.f32.mrb[0].mxu0
    %581 = vmatprep.mubr.f32.mxu0 0.0
    %582 = vmatmul.mubr.f32.gmra.mrb[0].mxu0 %v228
    %v583 = vpop.f32.mrb[0].mxu0
    %v584 = vadd.f32 0.0, %v583
    %v585 = vpop.f32.mrb[0].mxu0
    %586 = vmatprep.mubr.f32.mxu0 0.0
    %587 = vmatmul.mubr.f32.gmra.mrb[0].mxu0 %v231
    %v588 = vpop.f32.mrb[0].mxu0
    %v589 = vadd.f32 0.0, %v588
    %v590 = vpop.f32.mrb[0].mxu0
    %591 = vmatprep.mubr.f32.mxu0 0.0
    %592 = vmatmul.mubr.f32.gmra.mrb[0].mxu0 %v234
    %v593 = vpop.f32.mrb[0].mxu0
    %v594 = vadd.f32 0.0, %v593
    %v595 = vpop.f32.mrb[0].mxu0
    %596 = vmatprep.mubr.f32.mxu0 0.0
    %597 = vmatmul.mubr.f32.gmra.mrb[0].mxu0 %v237
    %v598 = vpop.f32.mrb[0].mxu0
    %v599 = vadd.f32 0.0, %v598
    %v600 = vpop.f32.mrb[0].mxu0
    %601 = vmatprep.mubr.f32.mxu0 0.0
    %602 = vmatmul.mubr.f32.gmra.mrb[0].mxu0 %v240
    %v603 = vpop.f32.mrb[0].mxu0
    %v604 = vadd.f32 0.0, %v603
    %v605 = vpop.f32.mrb[0].mxu0
    %606 = vmatprep.mubr.f32.mxu0 0.0
    %607 = vmatmul.mubr.f32.gmra.mrb[0].mxu0 %v243
    %v608 = vpop.f32.mrb[0].mxu0
    %v609 = vadd.f32 0.0, %v608
    %v610 = vpop.f32.mrb[0].mxu0
    %611 = vmatprep.mubr.f32.mxu0 0.0
    %612 = vmatmul.mubr.f32.gmra.mrb[0].mxu0 %v246
    %v613 = vpop.f32.mrb[0].mxu0
    %v614 = vadd.f32 0.0, %v613
    %v615 = vpop.f32.mrb[0].mxu0
    %616 = vmatprep.mubr.f32.mxu0 0.0
    %617 = vmatmul.mubr.f32.gmra.mrb[0].mxu0 %v249
    %v618 = vpop.f32.mrb[0].mxu0
    %v619 = vadd.f32 0.0, %v618
    %v620 = vpop.f32.mrb[0].mxu0
    %621 = vmatprep.mubr.f32.mxu0 0.0
    %622 = vmatmul.mubr.f32.gmra.mrb[0].mxu0 %v252
    %v623 = vpop.f32.mrb[0].mxu0
    %v624 = vadd.f32 0.0, %v623
    %v625 = vpop.f32.mrb[0].mxu0
    %626 = vmatprep.mubr.f32.mxu0 0.0
    %627 = vmatmul.mubr.f32.gmra.mrb[0].mxu0 %v255
    %v628 = vpop.f32.mrb[0].mxu0
    %v629 = vadd.f32 0.0, %v628
    %v630 = vpop.f32.mrb[0].mxu0
    %631 = vmatprep.mubr.f32.mxu0 0.0
    %632 = vmatmul.mubr.f32.gmra.mrb[0].mxu0 %v258
    %v633 = vpop.f32.mrb[0].mxu0
    %v634 = vadd.f32 0.0, %v633
    %v635 = vpop.f32.mrb[0].mxu0
    %636 = vmatprep.mubr.f32.mxu0 0.0
    %637 = vmatmul.mubr.f32.gmra.mrb[0].mxu0 %v261
    %v638 = vpop.f32.mrb[0].mxu0
    %v639 = vadd.f32 0.0, %v638
    %v640 = vpop.f32.mrb[0].mxu0
    %641 = vmatprep.mubr.f32.mxu0 0.0
    %642 = vmatmul.mubr.f32.gmra.mrb[0].mxu0 %v264
    %v643 = vpop.f32.mrb[0].mxu0
    %v644 = vadd.f32 0.0, %v643
    %v645 = vpop.f32.mrb[0].mxu0
    %646 = vmatprep.mubr.f32.mxu0 0.0
    %647 = vmatmul.mubr.f32.gmra.mrb[0].mxu0 %v267
    %v648 = vpop.f32.mrb[0].mxu0
    %v649 = vadd.f32 0.0, %v648
    %v650 = vpop.f32.mrb[0].mxu0
    %651 = vmatprep.mubr.f32.mxu0 0.0
    %652 = vmatmul.mubr.f32.gmra.mrb[0].mxu0 %v270
    %v653 = vpop.f32.mrb[0].mxu0
    %v654 = vadd.f32 0.0, %v653
    %v655 = vpop.f32.mrb[0].mxu0
    %656 = vmatprep.mubr.f32.mxu0 0.0
    %657 = vmatmul.mubr.f32.gmra.mrb[0].mxu0 %v273
    %v658 = vpop.f32.mrb[0].mxu0
    %v659 = vadd.f32 0.0, %v658
    %v660 = vpop.f32.mrb[0].mxu0
    %661 = vmatprep.mubr.f32.mxu0 0.0
    %662 = vmatmul.mubr.f32.gmra.mrb[0].mxu0 %v276
    %v663 = vpop.f32.mrb[0].mxu0
    %v664 = vadd.f32 0.0, %v663
    %v665 = vpop.f32.mrb[0].mxu0
    %666 = vmatprep.mubr.f32.mxu0 0.0
    %667 = vmatmul.mubr.f32.gmra.mrb[0].mxu0 %v279
    %v668 = vpop.f32.mrb[0].mxu0
    %v669 = vadd.f32 0.0, %v668
    %v670 = vpop.f32.mrb[0].mxu0
    %671 = vmatprep.mubr.f32.mxu0 0.0
    %672 = vmatmul.mubr.f32.gmra.mrb[0].mxu0 %v282
    %v673 = vpop.f32.mrb[0].mxu0
    %v674 = vadd.f32 0.0, %v673
    %v675 = vpop.f32.mrb[0].mxu0
    %676 = vmatprep.mubr.f32.mxu0 0.0
    %677 = vmatmul.mubr.f32.gmra.mrb[0].mxu0 %v285
    %v678 = vpop.f32.mrb[0].mxu0
    %v679 = vadd.f32 0.0, %v678
    %v680 = vpop.f32.mrb[0].mxu0
    %681 = vmatprep.mubr.f32.mxu0 0.0
    %682 = vmatmul.mubr.f32.gmra.mrb[0].mxu0 %v288
    %v683 = vpop.f32.mrb[0].mxu0
    %v684 = vadd.f32 0.0, %v683
    %v685 = vpop.f32.mrb[0].mxu0
    %686 = vmatprep.mubr.f32.mxu0 0.0
    %687 = vmatmul.mubr.f32.gmra.mrb[0].mxu0 %v291
    %v688 = vpop.f32.mrb[0].mxu0
    %v689 = vadd.f32 0.0, %v688
    %v690 = vpop.f32.mrb[0].mxu0
    %691 = vmatprep.mubr.f32.mxu0 0.0
    %692 = vmatmul.mubr.f32.gmra.mrb[0].mxu0 %v294
    %v693 = vpop.f32.mrb[0].mxu0
    %v694 = vadd.f32 0.0, %v693
    %v695 = vpop.f32.mrb[0].mxu0
    %696 = vmatprep.mubr.f32.mxu0 0.0
    %697 = vmatmul.mubr.f32.gmra.mrb[0].mxu0 %v297
    %v698 = vpop.f32.mrb[0].mxu0
    %v699 = vadd.f32 0.0, %v698
    %v700 = vpop.f32.mrb[0].mxu0
    %701 = vmatprep.mubr.f32.mxu0 0.0
    %702 = vmatmul.mubr.f32.gmra.mrb[0].mxu0 %v300
    %v703 = vpop.f32.mrb[0].mxu0
    %v704 = vadd.f32 0.0, %v703
    %v705 = vpop.f32.mrb[0].mxu0
    %706 = vmatprep.mubr.f32.mxu0 0.0
    %707 = vmatmul.mubr.f32.gmra.mrb[0].mxu0 %v303
    %v708 = vpop.f32.mrb[0].mxu0
    %v709 = vadd.f32 0.0, %v708
    %v710 = vpop.f32.mrb[0].mxu0
    %711 = vmatprep.mubr.f32.mxu0 0.0
    %712 = vmatmul.mubr.f32.gmra.mrb[0].mxu0 %v306
    %v713 = vpop.f32.mrb[0].mxu0
    %v714 = vadd.f32 0.0, %v713
    %v715 = vpop.f32.mrb[0].mxu0
    %716 = vmatprep.mubr.f32.mxu0 0.0
    %717 = vmatmul.mubr.f32.gmra.mrb[0].mxu0 %v309
    %v718 = vpop.f32.mrb[0].mxu0
    %v719 = vadd.f32 0.0, %v718
    %v720 = vpop.f32.mrb[0].mxu0
    %721 = vmatprep.mubr.f32.mxu0 0.0
    %722 = vmatmul.mubr.f32.gmra.mrb[0].mxu0 %v312
    %v723 = vpop.f32.mrb[0].mxu0
    %v724 = vadd.f32 0.0, %v723
    %v725 = vpop.f32.mrb[0].mxu0
    %726 = vmatprep.mubr.f32.mxu0 0.0
    %727 = vmatmul.mubr.f32.gmra.mrb[0].mxu0 %v315
    %v728 = vpop.f32.mrb[0].mxu0
    %v729 = vadd.f32 0.0, %v728
    %v730 = vpop.f32.mrb[0].mxu0
    %731 = vmatprep.mubr.f32.mxu0 0.0
    %732 = vmatmul.mubr.f32.gmra.mrb[0].mxu0 %v318
    %v733 = vpop.f32.mrb[0].mxu0
    %v734 = vadd.f32 0.0, %v733
    %v735 = vpop.f32.mrb[0].mxu0
    %736 = vmatprep.mubr.f32.mxu0 0.0
    %737 = vmatmul.mubr.f32.gmra.mrb[0].mxu0 %v321
    %v738 = vpop.f32.mrb[0].mxu0
    %v739 = vadd.f32 0.0, %v738
    %v740 = vpop.f32.mrb[0].mxu0
    %741 = vmatprep.mubr.f32.mxu0 0.0
    %742 = vmatmul.mubr.f32.gmra.mrb[0].mxu0 %v324
    %v743 = vpop.f32.mrb[0].mxu0
    %v744 = vadd.f32 0.0, %v743
    %v745 = vpop.f32.mrb[0].mxu0
    %746 = vmatprep.mubr.f32.mxu0 0.0
    %747 = vmatmul.mubr.f32.gmra.mrb[0].mxu0 %v327
    %v748 = vpop.f32.mrb[0].mxu0
    %v749 = vadd.f32 0.0, %v748
    %v750 = vpop.f32.mrb[0].mxu0
    %751 = vmatprep.mubr.f32.mxu0 0.0
    %752 = vmatmul.mubr.f32.gmra.mrb[0].mxu0 %v330
    %v753 = vpop.f32.mrb[0].mxu0
    %v754 = vadd.f32 0.0, %v753
    %v755 = vpop.f32.mrb[0].mxu0
    %756 = vmatprep.mubr.f32.mxu0 0.0
    %757 = vmatmul.mubr.f32.gmra.mrb[0].mxu0 %v333
    %v758 = vpop.f32.mrb[0].mxu0
    %v759 = vadd.f32 0.0, %v758
    %v760 = vpop.f32.mrb[0].mxu0
    %761 = vmatprep.mubr.f32.mxu0 0.0
    %762 = vmatmul.mubr.f32.gmra.mrb[0].mxu0 %v336
    %v763 = vpop.f32.mrb[0].mxu0
    %v764 = vadd.f32 0.0, %v763
    %v765 = vpop.f32.mrb[0].mxu0
    %766 = vdwg.mxu0
    %v767 = vmax.f32 %v409, %v499
    %v768 = vmax.f32 %v414, %v504
    %v769 = vmax.f32 %v419, %v509
    %v770 = vmax.f32 %v424, %v514
    %v771 = vmax.f32 %v429, %v519
    %v772 = vmax.f32 %v434, %v524
    %v773 = vmax.f32 %v439, %v529
    %v774 = vmax.f32 %v444, %v534
    %v775 = vmax.f32 %v449, %v539
    %v776 = vmax.f32 %v454, %v544
    %v777 = vmax.f32 %v459, %v549
    %v778 = vmax.f32 %v464, %v554
    %v779 = vmax.f32 %v469, %v559
    %v780 = vmax.f32 %v474, %v564
    %v781 = vmax.f32 %v479, %v569
    %v782 = vmax.f32 %v484, %v574
    %v783 = vmax.f32 %v489, %v579
    %v784 = vmax.f32 %v494, %v584
    %v785 = vmax.f32 %v589, %v679
    %v786 = vmax.f32 %v594, %v684
    %v787 = vmax.f32 %v599, %v689
    %v788 = vmax.f32 %v604, %v694
    %v789 = vmax.f32 %v609, %v699
    %v790 = vmax.f32 %v614, %v704
    %v791 = vmax.f32 %v619, %v709
    %v792 = vmax.f32 %v624, %v714
    %v793 = vmax.f32 %v629, %v719
    %v794 = vmax.f32 %v634, %v724
    %v795 = vmax.f32 %v639, %v729
    %v796 = vmax.f32 %v644, %v734
    %v797 = vmax.f32 %v649, %v739
    %v798 = vmax.f32 %v654, %v744
    %v799 = vmax.f32 %v659, %v749
    %v800 = vmax.f32 %v664, %v754
    %v801 = vmax.f32 %v669, %v759
    %v802 = vmax.f32 %v674, %v764
    %v803 = vmax.f32 %v767, %v785
    %v804 = vmax.f32 %v768, %v786
    %v805 = vmax.f32 %v769, %v787
    %v806 = vmax.f32 %v770, %v788
    %v807 = vmax.f32 %v771, %v789
    %v808 = vmax.f32 %v772, %v790
    %v809 = vmax.f32 %v773, %v791
    %v810 = vmax.f32 %v774, %v792
    %v811 = vmax.f32 %v775, %v793
    %v812 = vmax.f32 %v776, %v794
    %v813 = vmax.f32 %v777, %v795
    %v814 = vmax.f32 %v778, %v796
    %v815 = vmax.f32 %v779, %v797
    %v816 = vmax.f32 %v780, %v798
    %v817 = vmax.f32 %v781, %v799
    %v818 = vmax.f32 %v782, %v800
    %v819 = vmax.f32 %v783, %v801
    %v820 = vmax.f32 %v784, %v802
    %v821 = vld [vmem:[%s2] sm:$0x1]
    %v823 = vlaneseq
    %v824 = vshrl.u32 %v823, 7
    %v825 = vsub.s32 0, %v824
    %v826 = vrot.slane %v821, %v825
    %v828 = vadd.f32 %v803, %v826
    %v829 = vadd.f32 %v804, %v826
    %v830 = vadd.f32 %v805, %v826
    %v831 = vadd.f32 %v806, %v826
    %v832 = vadd.f32 %v807, %v826
    %v833 = vadd.f32 %v808, %v826
    %v834 = vadd.f32 %v809, %v826
    %v835 = vadd.f32 %v810, %v826
    %v836 = vadd.f32 %v811, %v826
    %v837 = vadd.f32 %v812, %v826
    %v838 = vadd.f32 %v813, %v826
    %v839 = vadd.f32 %v814, %v826
    %v840 = vadd.f32 %v815, %v826
    %v841 = vadd.f32 %v816, %v826
    %v842 = vadd.f32 %v817, %v826
    %v843 = vadd.f32 %v818, %v826
    %v844 = vadd.f32 %v819, %v826
    %v845 = vadd.f32 %v820, %v826
    %v846 = vmax.f32 %v828, 0.0
    %v847 = vmax.f32 %v829, 0.0
    %v848 = vmax.f32 %v830, 0.0
    %v849 = vmax.f32 %v831, 0.0
    %v850 = vmax.f32 %v832, 0.0
    %v851 = vmax.f32 %v833, 0.0
    %v852 = vmax.f32 %v834, 0.0
    %v853 = vmax.f32 %v835, 0.0
    %v854 = vmax.f32 %v836, 0.0
    %v855 = vmax.f32 %v837, 0.0
    %v856 = vmax.f32 %v838, 0.0
    %v857 = vmax.f32 %v839, 0.0
    %v858 = vmax.f32 %v840, 0.0
    %v859 = vmax.f32 %v841, 0.0
    %v860 = vmax.f32 %v842, 0.0
    %v861 = vmax.f32 %v843, 0.0
    %v862 = vmax.f32 %v844, 0.0
    %v863 = vmax.f32 %v845, 0.0
    %v864 = vld [vmem:[%s3] sm:$0x3f]
    %s865 = scalar_lea.vmem %s3, 8
    %v866 = vld [vmem:[%s865] sm:$0x3f]
    %vm867 = vcmask 48128
    %v869 = vsel %vm867, %v848, 0
    %v872 = vsel %vm867, %v849, 0
    %vm874 = vcmask 1045504
    %v876 = vsel %vm874, %v866, 0
    %878 = vmatprep.subr.mxu0 0.0
    %879 = vmatpush1.msra.mxu0 %v876
    %880 = vmatprep.subr.mxu0 0.0
    %881 = vmatpush1.msra.mxu0 0.0
    %882 = vmatprep.subr.mxu0 0.0
    %883 = vmatpush1.msra.mxu0 0.0
    %884 = vmatprep.subr.mxu0 0.0
    %885 = vmatpush1.msra.mxu0 0.0
    %886 = vmatprep.subr.mxu0 0.0
    %887 = vmatpush1.msra.mxu0 0.0
    %888 = vmatprep.subr.mxu0 0.0
    %889 = vmatpush1.msra.mxu0 0.0
    %890 = vmatprep.subr.mxu0 0.0
    %891 = vmatpush1.msra.mxu0 0.0
    %892 = vmatprep.subr.mxu0 0.0
    %893 = vmatpush1.msra.mxu0 0.0
    %894 = vmatprep.subr.mxu0 0.0
    %895 = vmatpush1.msra.mxu0 0.0
    %896 = vmatprep.subr.mxu0 0.0
    %897 = vmatpush1.msra.mxu0 0.0
    %898 = vmatprep.subr.mxu0 0.0
    %899 = vmatpush1.msra.mxu0 0.0
    %900 = vmatprep.subr.mxu0 0.0
    %901 = vmatpush1.msra.mxu0 0.0
    %902 = vmatprep.subr.mxu0 0.0
    %903 = vmatpush1.msra.mxu0 0.0
    %904 = vmatprep.subr.mxu0 0.0
    %905 = vmatpush1.msra.mxu0 0.0
    %906 = vmatprep.subr.mxu0 0.0
    %907 = vmatpush1.msra.mxu0 0.0
    %908 = vmatprep.subr.mxu0 0.0
    %909 = vmatpush1.msra.mxu0 0.0
    %910 = vmatprep.subr.mxu0 0.0
    %911 = vmatpush1.msra.mxu0 0.0
    %912 = vmatprep.subr.mxu0 0.0
    %913 = vmatpush1.msra.mxu0 0.0
    %914 = vmatprep.subr.mxu0 0.0
    %915 = vmatpush1.msra.mxu0 0.0
    %916 = vmatprep.subr.mxu0 0.0
    %917 = vmatpush1.msra.mxu0 0.0
    %918 = vmatprep.subr.mxu0 0.0
    %919 = vmatpush1.msra.mxu0 0.0
    %920 = vmatprep.subr.mxu0 0.0
    %921 = vmatpush1.msra.mxu0 0.0
    %922 = vmatprep.subr.mxu0 0.0
    %923 = vmatpush1.msra.mxu0 0.0
    %924 = vmatprep.subr.mxu0 0.0
    %925 = vmatpush1.msra.mxu0 0.0
    %926 = vmatprep.subr.mxu0 0.0
    %927 = vmatpush1.msra.mxu0 0.0
    %928 = vmatprep.subr.mxu0 0.0
    %929 = vmatpush1.msra.mxu0 0.0
    %930 = vmatprep.subr.mxu0 0.0
    %931 = vmatpush1.msra.mxu0 0.0
    %932 = vmatprep.subr.mxu0 0.0
    %933 = vmatpush1.msra.mxu0 0.0
    %934 = vmatprep.subr.mxu0 0.0
    %935 = vmatpush1.msra.mxu0 0.0
    %936 = vmatprep.subr.mxu0 0.0
    %937 = vmatpush1.msra.mxu0 0.0
    %938 = vmatprep.subr.mxu0 0.0
    %939 = vmatpush1.msra.mxu0 0.0
    %940 = vmatprep.subr.mxu0 0.0
    %941 = vmatpush1.msra.mxu0 0.0
    %942 = vmatprep.mubr.f32.mxu0 0.0
    %943 = vmatmul.mubr.f32.gmra.mrb[0].mxu0 %v869
    %v944 = vpop.f32.mrb[0].mxu0
    %v945 = vadd.f32 0.0, %v944
    %v946 = vpop.f32.mrb[0].mxu0
    %947 = vmatprep.mubr.f32.mxu0 0.0
    %948 = vmatmul.mubr.f32.gmra.mrb[0].mxu0 %v872
    %v949 = vpop.f32.mrb[0].mxu0
    %v950 = vadd.f32 0.0, %v949
    %v951 = vpop.f32.mrb[0].mxu0
    %952 = vdwg.mxu0
    %v954 = vsel %vm867, %v846, 0
    %v957 = vsel %vm867, %v847, 0
    %v960 = vsel %vm874, %v864, 0
    %962 = vmatprep.subr.mxu0 0.0
    %963 = vmatpush1.msra.mxu0 %v960
    %964 = vmatprep.subr.mxu0 0.0
    %965 = vmatpush1.msra.mxu0 0.0
    %966 = vmatprep.subr.mxu0 0.0
    %967 = vmatpush1.msra.mxu0 0.0
    %968 = vmatprep.subr.mxu0 0.0
    %969 = vmatpush1.msra.mxu0 0.0
    %970 = vmatprep.subr.mxu0 0.0
    %971 = vmatpush1.msra.mxu0 0.0
    %972 = vmatprep.subr.mxu0 0.0
    %973 = vmatpush1.msra.mxu0 0.0
    %974 = vmatprep.subr.mxu0 0.0
    %975 = vmatpush1.msra.mxu0 0.0
    %976 = vmatprep.subr.mxu0 0.0
    %977 = vmatpush1.msra.mxu0 0.0
    %978 = vmatprep.subr.mxu0 0.0
    %979 = vmatpush1.msra.mxu0 0.0
    %980 = vmatprep.subr.mxu0 0.0
    %981 = vmatpush1.msra.mxu0 0.0
    %982 = vmatprep.subr.mxu0 0.0
    %983 = vmatpush1.msra.mxu0 0.0
    %984 = vmatprep.subr.mxu0 0.0
    %985 = vmatpush1.msra.mxu0 0.0
    %986 = vmatprep.subr.mxu0 0.0
    %987 = vmatpush1.msra.mxu0 0.0
    %988 = vmatprep.subr.mxu0 0.0
    %989 = vmatpush1.msra.mxu0 0.0
    %990 = vmatprep.subr.mxu0 0.0
    %991 = vmatpush1.msra.mxu0 0.0
    %992 = vmatprep.subr.mxu0 0.0
    %993 = vmatpush1.msra.mxu0 0.0
    %994 = vmatprep.subr.mxu0 0.0
    %995 = vmatpush1.msra.mxu0 0.0
    %996 = vmatprep.subr.mxu0 0.0
    %997 = vmatpush1.msra.mxu0 0.0
    %998 = vmatprep.subr.mxu0 0.0
    %999 = vmatpush1.msra.mxu0 0.0
    %1000 = vmatprep.subr.mxu0 0.0
    %1001 = vmatpush1.msra.mxu0 0.0
    %1002 = vmatprep.subr.mxu0 0.0
    %1003 = vmatpush1.msra.mxu0 0.0
    %1004 = vmatprep.subr.mxu0 0.0
    %1005 = vmatpush1.msra.mxu0 0.0
    %1006 = vmatprep.subr.mxu0 0.0
    %1007 = vmatpush1.msra.mxu0 0.0
    %1008 = vmatprep.subr.mxu0 0.0
    %1009 = vmatpush1.msra.mxu0 0.0
    %1010 = vmatprep.subr.mxu0 0.0
    %1011 = vmatpush1.msra.mxu0 0.0
    %1012 = vmatprep.subr.mxu0 0.0
    %1013 = vmatpush1.msra.mxu0 0.0
    %1014 = vmatprep.subr.mxu0 0.0
    %1015 = vmatpush1.msra.mxu0 0.0
    %1016 = vmatprep.subr.mxu0 0.0
    %1017 = vmatpush1.msra.mxu0 0.0
    %1018 = vmatprep.subr.mxu0 0.0
    %1019 = vmatpush1.msra.mxu0 0.0
    %1020 = vmatprep.subr.mxu0 0.0
    %1021 = vmatpush1.msra.mxu0 0.0
    %1022 = vmatprep.subr.mxu0 0.0
    %1023 = vmatpush1.msra.mxu0 0.0
    %1024 = vmatprep.subr.mxu0 0.0
    %1025 = vmatpush1.msra.mxu0 0.0
    %1026 = vmatprep.mubr.f32.mxu0 0.0
    %1027 = vmatmul.mubr.f32.gmra.mrb[0].mxu0 %v954
    %v1028 = vpop.f32.mrb[0].mxu0
    %v1029 = vadd.f32 %v945, %v1028
    %v1030 = vpop.f32.mrb[0].mxu0
    %1031 = vmatprep.mubr.f32.mxu0 0.0
    %1032 = vmatmul.mubr.f32.gmra.mrb[0].mxu0 %v957
    %v1033 = vpop.f32.mrb[0].mxu0
    %v1034 = vadd.f32 %v950, %v1033
    %v1035 = vpop.f32.mrb[0].mxu0
    %1036 = vdwg.mxu0
    %s1037 = scalar_lea.vmem %s3, 16
    %v1038 = vld [vmem:[%s1037] sm:$0x3f]
    %v1040 = vsel %vm867, %v850, 0
    %v1043 = vsel %vm867, %v851, 0
    %v1046 = vsel %vm874, %v1038, 0
    %1048 = vmatprep.subr.mxu0 0.0
    %1049 = vmatpush1.msra.mxu0 %v1046
    %1050 = vmatprep.subr.mxu0 0.0
    %1051 = vmatpush1.msra.mxu0 0.0
    %1052 = vmatprep.subr.mxu0 0.0
    %1053 = vmatpush1.msra.mxu0 0.0
    %1054 = vmatprep.subr.mxu0 0.0
    %1055 = vmatpush1.msra.mxu0 0.0
    %1056 = vmatprep.subr.mxu0 0.0
    %1057 = vmatpush1.msra.mxu0 0.0
    %1058 = vmatprep.subr.mxu0 0.0
    %1059 = vmatpush1.msra.mxu0 0.0
    %1060 = vmatprep.subr.mxu0 0.0
    %1061 = vmatpush1.msra.mxu0 0.0
    %1062 = vmatprep.subr.mxu0 0.0
    %1063 = vmatpush1.msra.mxu0 0.0
    %1064 = vmatprep.subr.mxu0 0.0
    %1065 = vmatpush1.msra.mxu0 0.0
    %1066 = vmatprep.subr.mxu0 0.0
    %1067 = vmatpush1.msra.mxu0 0.0
    %1068 = vmatprep.subr.mxu0 0.0
    %1069 = vmatpush1.msra.mxu0 0.0
    %1070 = vmatprep.subr.mxu0 0.0
    %1071 = vmatpush1.msra.mxu0 0.0
    %1072 = vmatprep.subr.mxu0 0.0
    %1073 = vmatpush1.msra.mxu0 0.0
    %1074 = vmatprep.subr.mxu0 0.0
    %1075 = vmatpush1.msra.mxu0 0.0
    %1076 = vmatprep.subr.mxu0 0.0
    %1077 = vmatpush1.msra.mxu0 0.0
    %1078 = vmatprep.subr.mxu0 0.0
    %1079 = vmatpush1.msra.mxu0 0.0
    %1080 = vmatprep.subr.mxu0 0.0
    %1081 = vmatpush1.msra.mxu0 0.0
    %1082 = vmatprep.subr.mxu0 0.0
    %1083 = vmatpush1.msra.mxu0 0.0
    %1084 = vmatprep.subr.mxu0 0.0
    %1085 = vmatpush1.msra.mxu0 0.0
    %1086 = vmatprep.subr.mxu0 0.0
    %1087 = vmatpush1.msra.mxu0 0.0
    %1088 = vmatprep.subr.mxu0 0.0
    %1089 = vmatpush1.msra.mxu0 0.0
    %1090 = vmatprep.subr.mxu0 0.0
    %1091 = vmatpush1.msra.mxu0 0.0
    %1092 = vmatprep.subr.mxu0 0.0
    %1093 = vmatpush1.msra.mxu0 0.0
    %1094 = vmatprep.subr.mxu0 0.0
    %1095 = vmatpush1.msra.mxu0 0.0
    %1096 = vmatprep.subr.mxu0 0.0
    %1097 = vmatpush1.msra.mxu0 0.0
    %1098 = vmatprep.subr.mxu0 0.0
    %1099 = vmatpush1.msra.mxu0 0.0
    %1100 = vmatprep.subr.mxu0 0.0
    %1101 = vmatpush1.msra.mxu0 0.0
    %1102 = vmatprep.subr.mxu0 0.0
    %1103 = vmatpush1.msra.mxu0 0.0
    %1104 = vmatprep.subr.mxu0 0.0
    %1105 = vmatpush1.msra.mxu0 0.0
    %1106 = vmatprep.subr.mxu0 0.0
    %1107 = vmatpush1.msra.mxu0 0.0
    %1108 = vmatprep.subr.mxu0 0.0
    %1109 = vmatpush1.msra.mxu0 0.0
    %1110 = vmatprep.subr.mxu0 0.0
    %1111 = vmatpush1.msra.mxu0 0.0
    %1112 = vmatprep.mubr.f32.mxu0 0.0
    %1113 = vmatmul.mubr.f32.gmra.mrb[0].mxu0 %v1040
    %v1114 = vpop.f32.mrb[0].mxu0
    %v1115 = vadd.f32 0.0, %v1114
    %v1116 = vpop.f32.mrb[0].mxu0
    %1117 = vmatprep.mubr.f32.mxu0 0.0
    %1118 = vmatmul.mubr.f32.gmra.mrb[0].mxu0 %v1043
    %v1119 = vpop.f32.mrb[0].mxu0
    %v1120 = vadd.f32 0.0, %v1119
    %v1121 = vpop.f32.mrb[0].mxu0
    %1122 = vdwg.mxu0
    %v1123 = vadd.f32 %v1029, %v1115
    %v1124 = vadd.f32 %v1034, %v1120
    %s1125 = scalar_lea.vmem %s3, 24
    %v1126 = vld [vmem:[%s1125] sm:$0x3f]
    %v1128 = vsel %vm867, %v852, 0
    %v1131 = vsel %vm867, %v853, 0
    %v1134 = vsel %vm874, %v1126, 0
    %1136 = vmatprep.subr.mxu0 0.0
    %1137 = vmatpush1.msra.mxu0 %v1134
    %1138 = vmatprep.subr.mxu0 0.0
    %1139 = vmatpush1.msra.mxu0 0.0
    %1140 = vmatprep.subr.mxu0 0.0
    %1141 = vmatpush1.msra.mxu0 0.0
    %1142 = vmatprep.subr.mxu0 0.0
    %1143 = vmatpush1.msra.mxu0 0.0
    %1144 = vmatprep.subr.mxu0 0.0
    %1145 = vmatpush1.msra.mxu0 0.0
    %1146 = vmatprep.subr.mxu0 0.0
    %1147 = vmatpush1.msra.mxu0 0.0
    %1148 = vmatprep.subr.mxu0 0.0
    %1149 = vmatpush1.msra.mxu0 0.0
    %1150 = vmatprep.subr.mxu0 0.0
    %1151 = vmatpush1.msra.mxu0 0.0
    %1152 = vmatprep.subr.mxu0 0.0
    %1153 = vmatpush1.msra.mxu0 0.0
    %1154 = vmatprep.subr.mxu0 0.0
    %1155 = vmatpush1.msra.mxu0 0.0
    %1156 = vmatprep.subr.mxu0 0.0
    %1157 = vmatpush1.msra.mxu0 0.0
    %1158 = vmatprep.subr.mxu0 0.0
    %1159 = vmatpush1.msra.mxu0 0.0
    %1160 = vmatprep.subr.mxu0 0.0
    %1161 = vmatpush1.msra.mxu0 0.0
    %1162 = vmatprep.subr.mxu0 0.0
    %1163 = vmatpush1.msra.mxu0 0.0
    %1164 = vmatprep.subr.mxu0 0.0
    %1165 = vmatpush1.msra.mxu0 0.0
    %1166 = vmatprep.subr.mxu0 0.0
    %1167 = vmatpush1.msra.mxu0 0.0
    %1168 = vmatprep.subr.mxu0 0.0
    %1169 = vmatpush1.msra.mxu0 0.0
    %1170 = vmatprep.subr.mxu0 0.0
    %1171 = vmatpush1.msra.mxu0 0.0
    %1172 = vmatprep.subr.mxu0 0.0
    %1173 = vmatpush1.msra.mxu0 0.0
    %1174 = vmatprep.subr.mxu0 0.0
    %1175 = vmatpush1.msra.mxu0 0.0
    %1176 = vmatprep.subr.mxu0 0.0
    %1177 = vmatpush1.msra.mxu0 0.0
    %1178 = vmatprep.subr.mxu0 0.0
    %1179 = vmatpush1.msra.mxu0 0.0
    %1180 = vmatprep.subr.mxu0 0.0
    %1181 = vmatpush1.msra.mxu0 0.0
    %1182 = vmatprep.subr.mxu0 0.0
    %1183 = vmatpush1.msra.mxu0 0.0
    %1184 = vmatprep.subr.mxu0 0.0
    %1185 = vmatpush1.msra.mxu0 0.0
    %1186 = vmatprep.subr.mxu0 0.0
    %1187 = vmatpush1.msra.mxu0 0.0
    %1188 = vmatprep.subr.mxu0 0.0
    %1189 = vmatpush1.msra.mxu0 0.0
    %1190 = vmatprep.subr.mxu0 0.0
    %1191 = vmatpush1.msra.mxu0 0.0
    %1192 = vmatprep.subr.mxu0 0.0
    %1193 = vmatpush1.msra.mxu0 0.0
    %1194 = vmatprep.subr.mxu0 0.0
    %1195 = vmatpush1.msra.mxu0 0.0
    %1196 = vmatprep.subr.mxu0 0.0
    %1197 = vmatpush1.msra.mxu0 0.0
    %1198 = vmatprep.subr.mxu0 0.0
    %1199 = vmatpush1.msra.mxu0 0.0
    %1200 = vmatprep.mubr.f32.mxu0 0.0
    %1201 = vmatmul.mubr.f32.gmra.mrb[0].mxu0 %v1128
    %v1202 = vpop.f32.mrb[0].mxu0
    %v1203 = vadd.f32 0.0, %v1202
    %v1204 = vpop.f32.mrb[0].mxu0
    %1205 = vmatprep.mubr.f32.mxu0 0.0
    %1206 = vmatmul.mubr.f32.gmra.mrb[0].mxu0 %v1131
    %v1207 = vpop.f32.mrb[0].mxu0
    %v1208 = vadd.f32 0.0, %v1207
    %v1209 = vpop.f32.mrb[0].mxu0
    %1210 = vdwg.mxu0
    %v1211 = vadd.f32 %v1123, %v1203
    %v1212 = vadd.f32 %v1124, %v1208
    %s1213 = scalar_lea.vmem %s3, 32
    %v1214 = vld [vmem:[%s1213] sm:$0x3f]
    %v1216 = vsel %vm867, %v854, 0
    %v1219 = vsel %vm867, %v855, 0
    %v1222 = vsel %vm874, %v1214, 0
    %1224 = vmatprep.subr.mxu0 0.0
    %1225 = vmatpush1.msra.mxu0 %v1222
    %1226 = vmatprep.subr.mxu0 0.0
    %1227 = vmatpush1.msra.mxu0 0.0
    %1228 = vmatprep.subr.mxu0 0.0
    %1229 = vmatpush1.msra.mxu0 0.0
    %1230 = vmatprep.subr.mxu0 0.0
    %1231 = vmatpush1.msra.mxu0 0.0
    %1232 = vmatprep.subr.mxu0 0.0
    %1233 = vmatpush1.msra.mxu0 0.0
    %1234 = vmatprep.subr.mxu0 0.0
    %1235 = vmatpush1.msra.mxu0 0.0
    %1236 = vmatprep.subr.mxu0 0.0
    %1237 = vmatpush1.msra.mxu0 0.0
    %1238 = vmatprep.subr.mxu0 0.0
    %1239 = vmatpush1.msra.mxu0 0.0
    %1240 = vmatprep.subr.mxu0 0.0
    %1241 = vmatpush1.msra.mxu0 0.0
    %1242 = vmatprep.subr.mxu0 0.0
    %1243 = vmatpush1.msra.mxu0 0.0
    %1244 = vmatprep.subr.mxu0 0.0
    %1245 = vmatpush1.msra.mxu0 0.0
    %1246 = vmatprep.subr.mxu0 0.0
    %1247 = vmatpush1.msra.mxu0 0.0
    %1248 = vmatprep.subr.mxu0 0.0
    %1249 = vmatpush1.msra.mxu0 0.0
    %1250 = vmatprep.subr.mxu0 0.0
    %1251 = vmatpush1.msra.mxu0 0.0
    %1252 = vmatprep.subr.mxu0 0.0
    %1253 = vmatpush1.msra.mxu0 0.0
    %1254 = vmatprep.subr.mxu0 0.0
    %1255 = vmatpush1.msra.mxu0 0.0
    %1256 = vmatprep.subr.mxu0 0.0
    %1257 = vmatpush1.msra.mxu0 0.0
    %1258 = vmatprep.subr.mxu0 0.0
    %1259 = vmatpush1.msra.mxu0 0.0
    %1260 = vmatprep.subr.mxu0 0.0
    %1261 = vmatpush1.msra.mxu0 0.0
    %1262 = vmatprep.subr.mxu0 0.0
    %1263 = vmatpush1.msra.mxu0 0.0
    %1264 = vmatprep.subr.mxu0 0.0
    %1265 = vmatpush1.msra.mxu0 0.0
    %1266 = vmatprep.subr.mxu0 0.0
    %1267 = vmatpush1.msra.mxu0 0.0
    %1268 = vmatprep.subr.mxu0 0.0
    %1269 = vmatpush1.msra.mxu0 0.0
    %1270 = vmatprep.subr.mxu0 0.0
    %1271 = vmatpush1.msra.mxu0 0.0
    %1272 = vmatprep.subr.mxu0 0.0
    %1273 = vmatpush1.msra.mxu0 0.0
    %1274 = vmatprep.subr.mxu0 0.0
    %1275 = vmatpush1.msra.mxu0 0.0
    %1276 = vmatprep.subr.mxu0 0.0
    %1277 = vmatpush1.msra.mxu0 0.0
    %1278 = vmatprep.subr.mxu0 0.0
    %1279 = vmatpush1.msra.mxu0 0.0
    %1280 = vmatprep.subr.mxu0 0.0
    %1281 = vmatpush1.msra.mxu0 0.0
    %1282 = vmatprep.subr.mxu0 0.0
    %1283 = vmatpush1.msra.mxu0 0.0
    %1284 = vmatprep.subr.mxu0 0.0
    %1285 = vmatpush1.msra.mxu0 0.0
    %1286 = vmatprep.subr.mxu0 0.0
    %1287 = vmatpush1.msra.mxu0 0.0
    %1288 = vmatprep.mubr.f32.mxu0 0.0
    %1289 = vmatmul.mubr.f32.gmra.mrb[0].mxu0 %v1216
    %v1290 = vpop.f32.mrb[0].mxu0
    %v1291 = vadd.f32 0.0, %v1290
    %v1292 = vpop.f32.mrb[0].mxu0
    %1293 = vmatprep.mubr.f32.mxu0 0.0
    %1294 = vmatmul.mubr.f32.gmra.mrb[0].mxu0 %v1219
    %v1295 = vpop.f32.mrb[0].mxu0
    %v1296 = vadd.f32 0.0, %v1295
    %v1297 = vpop.f32.mrb[0].mxu0
    %1298 = vdwg.mxu0
    %v1299 = vadd.f32 %v1211, %v1291
    %v1300 = vadd.f32 %v1212, %v1296
    %s1301 = scalar_lea.vmem %s3, 40
    %v1302 = vld [vmem:[%s1301] sm:$0x3f]
    %v1304 = vsel %vm867, %v856, 0
    %v1307 = vsel %vm867, %v857, 0
    %v1310 = vsel %vm874, %v1302, 0
    %1312 = vmatprep.subr.mxu0 0.0
    %1313 = vmatpush1.msra.mxu0 %v1310
    %1314 = vmatprep.subr.mxu0 0.0
    %1315 = vmatpush1.msra.mxu0 0.0
    %1316 = vmatprep.subr.mxu0 0.0
    %1317 = vmatpush1.msra.mxu0 0.0
    %1318 = vmatprep.subr.mxu0 0.0
    %1319 = vmatpush1.msra.mxu0 0.0
    %1320 = vmatprep.subr.mxu0 0.0
    %1321 = vmatpush1.msra.mxu0 0.0
    %1322 = vmatprep.subr.mxu0 0.0
    %1323 = vmatpush1.msra.mxu0 0.0
    %1324 = vmatprep.subr.mxu0 0.0
    %1325 = vmatpush1.msra.mxu0 0.0
    %1326 = vmatprep.subr.mxu0 0.0
    %1327 = vmatpush1.msra.mxu0 0.0
    %1328 = vmatprep.subr.mxu0 0.0
    %1329 = vmatpush1.msra.mxu0 0.0
    %1330 = vmatprep.subr.mxu0 0.0
    %1331 = vmatpush1.msra.mxu0 0.0
    %1332 = vmatprep.subr.mxu0 0.0
    %1333 = vmatpush1.msra.mxu0 0.0
    %1334 = vmatprep.subr.mxu0 0.0
    %1335 = vmatpush1.msra.mxu0 0.0
    %1336 = vmatprep.subr.mxu0 0.0
    %1337 = vmatpush1.msra.mxu0 0.0
    %1338 = vmatprep.subr.mxu0 0.0
    %1339 = vmatpush1.msra.mxu0 0.0
    %1340 = vmatprep.subr.mxu0 0.0
    %1341 = vmatpush1.msra.mxu0 0.0
    %1342 = vmatprep.subr.mxu0 0.0
    %1343 = vmatpush1.msra.mxu0 0.0
    %1344 = vmatprep.subr.mxu0 0.0
    %1345 = vmatpush1.msra.mxu0 0.0
    %1346 = vmatprep.subr.mxu0 0.0
    %1347 = vmatpush1.msra.mxu0 0.0
    %1348 = vmatprep.subr.mxu0 0.0
    %1349 = vmatpush1.msra.mxu0 0.0
    %1350 = vmatprep.subr.mxu0 0.0
    %1351 = vmatpush1.msra.mxu0 0.0
    %1352 = vmatprep.subr.mxu0 0.0
    %1353 = vmatpush1.msra.mxu0 0.0
    %1354 = vmatprep.subr.mxu0 0.0
    %1355 = vmatpush1.msra.mxu0 0.0
    %1356 = vmatprep.subr.mxu0 0.0
    %1357 = vmatpush1.msra.mxu0 0.0
    %1358 = vmatprep.subr.mxu0 0.0
    %1359 = vmatpush1.msra.mxu0 0.0
    %1360 = vmatprep.subr.mxu0 0.0
    %1361 = vmatpush1.msra.mxu0 0.0
    %1362 = vmatprep.subr.mxu0 0.0
    %1363 = vmatpush1.msra.mxu0 0.0
    %1364 = vmatprep.subr.mxu0 0.0
    %1365 = vmatpush1.msra.mxu0 0.0
    %1366 = vmatprep.subr.mxu0 0.0
    %1367 = vmatpush1.msra.mxu0 0.0
    %1368 = vmatprep.subr.mxu0 0.0
    %1369 = vmatpush1.msra.mxu0 0.0
    %1370 = vmatprep.subr.mxu0 0.0
    %1371 = vmatpush1.msra.mxu0 0.0
    %1372 = vmatprep.subr.mxu0 0.0
    %1373 = vmatpush1.msra.mxu0 0.0
    %1374 = vmatprep.subr.mxu0 0.0
    %1375 = vmatpush1.msra.mxu0 0.0
    %1376 = vmatprep.mubr.f32.mxu0 0.0
    %1377 = vmatmul.mubr.f32.gmra.mrb[0].mxu0 %v1304
    %v1378 = vpop.f32.mrb[0].mxu0
    %v1379 = vadd.f32 0.0, %v1378
    %v1380 = vpop.f32.mrb[0].mxu0
    %1381 = vmatprep.mubr.f32.mxu0 0.0
    %1382 = vmatmul.mubr.f32.gmra.mrb[0].mxu0 %v1307
    %v1383 = vpop.f32.mrb[0].mxu0
    %v1384 = vadd.f32 0.0, %v1383
    %v1385 = vpop.f32.mrb[0].mxu0
    %1386 = vdwg.mxu0
    %v1387 = vadd.f32 %v1299, %v1379
    %v1388 = vadd.f32 %v1300, %v1384
    %s1389 = scalar_lea.vmem %s3, 48
    %v1390 = vld [vmem:[%s1389] sm:$0x3f]
    %v1392 = vsel %vm867, %v858, 0
    %v1395 = vsel %vm867, %v859, 0
    %v1398 = vsel %vm874, %v1390, 0
    %1400 = vmatprep.subr.mxu0 0.0
    %1401 = vmatpush1.msra.mxu0 %v1398
    %1402 = vmatprep.subr.mxu0 0.0
    %1403 = vmatpush1.msra.mxu0 0.0
    %1404 = vmatprep.subr.mxu0 0.0
    %1405 = vmatpush1.msra.mxu0 0.0
    %1406 = vmatprep.subr.mxu0 0.0
    %1407 = vmatpush1.msra.mxu0 0.0
    %1408 = vmatprep.subr.mxu0 0.0
    %1409 = vmatpush1.msra.mxu0 0.0
    %1410 = vmatprep.subr.mxu0 0.0
    %1411 = vmatpush1.msra.mxu0 0.0
    %1412 = vmatprep.subr.mxu0 0.0
    %1413 = vmatpush1.msra.mxu0 0.0
    %1414 = vmatprep.subr.mxu0 0.0
    %1415 = vmatpush1.msra.mxu0 0.0
    %1416 = vmatprep.subr.mxu0 0.0
    %1417 = vmatpush1.msra.mxu0 0.0
    %1418 = vmatprep.subr.mxu0 0.0
    %1419 = vmatpush1.msra.mxu0 0.0
    %1420 = vmatprep.subr.mxu0 0.0
    %1421 = vmatpush1.msra.mxu0 0.0
    %1422 = vmatprep.subr.mxu0 0.0
    %1423 = vmatpush1.msra.mxu0 0.0
    %1424 = vmatprep.subr.mxu0 0.0
    %1425 = vmatpush1.msra.mxu0 0.0
    %1426 = vmatprep.subr.mxu0 0.0
    %1427 = vmatpush1.msra.mxu0 0.0
    %1428 = vmatprep.subr.mxu0 0.0
    %1429 = vmatpush1.msra.mxu0 0.0
    %1430 = vmatprep.subr.mxu0 0.0
    %1431 = vmatpush1.msra.mxu0 0.0
    %1432 = vmatprep.subr.mxu0 0.0
    %1433 = vmatpush1.msra.mxu0 0.0
    %1434 = vmatprep.subr.mxu0 0.0
    %1435 = vmatpush1.msra.mxu0 0.0
    %1436 = vmatprep.subr.mxu0 0.0
    %1437 = vmatpush1.msra.mxu0 0.0
    %1438 = vmatprep.subr.mxu0 0.0
    %1439 = vmatpush1.msra.mxu0 0.0
    %1440 = vmatprep.subr.mxu0 0.0
    %1441 = vmatpush1.msra.mxu0 0.0
    %1442 = vmatprep.subr.mxu0 0.0
    %1443 = vmatpush1.msra.mxu0 0.0
    %1444 = vmatprep.subr.mxu0 0.0
    %1445 = vmatpush1.msra.mxu0 0.0
    %1446 = vmatprep.subr.mxu0 0.0
    %1447 = vmatpush1.msra.mxu0 0.0
    %1448 = vmatprep.subr.mxu0 0.0
    %1449 = vmatpush1.msra.mxu0 0.0
    %1450 = vmatprep.subr.mxu0 0.0
    %1451 = vmatpush1.msra.mxu0 0.0
    %1452 = vmatprep.subr.mxu0 0.0
    %1453 = vmatpush1.msra.mxu0 0.0
    %1454 = vmatprep.subr.mxu0 0.0
    %1455 = vmatpush1.msra.mxu0 0.0
    %1456 = vmatprep.subr.mxu0 0.0
    %1457 = vmatpush1.msra.mxu0 0.0
    %1458 = vmatprep.subr.mxu0 0.0
    %1459 = vmatpush1.msra.mxu0 0.0
    %1460 = vmatprep.subr.mxu0 0.0
    %1461 = vmatpush1.msra.mxu0 0.0
    %1462 = vmatprep.subr.mxu0 0.0
    %1463 = vmatpush1.msra.mxu0 0.0
    %1464 = vmatprep.mubr.f32.mxu0 0.0
    %1465 = vmatmul.mubr.f32.gmra.mrb[0].mxu0 %v1392
    %v1466 = vpop.f32.mrb[0].mxu0
    %v1467 = vadd.f32 0.0, %v1466
    %v1468 = vpop.f32.mrb[0].mxu0
    %1469 = vmatprep.mubr.f32.mxu0 0.0
    %1470 = vmatmul.mubr.f32.gmra.mrb[0].mxu0 %v1395
    %v1471 = vpop.f32.mrb[0].mxu0
    %v1472 = vadd.f32 0.0, %v1471
    %v1473 = vpop.f32.mrb[0].mxu0
    %1474 = vdwg.mxu0
    %v1475 = vadd.f32 %v1387, %v1467
    %v1476 = vadd.f32 %v1388, %v1472
    %s1477 = scalar_lea.vmem %s3, 56
    %v1478 = vld [vmem:[%s1477] sm:$0x3f]
    %v1480 = vsel %vm867, %v860, 0
    %v1483 = vsel %vm867, %v861, 0
    %v1486 = vsel %vm874, %v1478, 0
    %1488 = vmatprep.subr.mxu0 0.0
    %1489 = vmatpush1.msra.mxu0 %v1486
    %1490 = vmatprep.subr.mxu0 0.0
    %1491 = vmatpush1.msra.mxu0 0.0
    %1492 = vmatprep.subr.mxu0 0.0
    %1493 = vmatpush1.msra.mxu0 0.0
    %1494 = vmatprep.subr.mxu0 0.0
    %1495 = vmatpush1.msra.mxu0 0.0
    %1496 = vmatprep.subr.mxu0 0.0
    %1497 = vmatpush1.msra.mxu0 0.0
    %1498 = vmatprep.subr.mxu0 0.0
    %1499 = vmatpush1.msra.mxu0 0.0
    %1500 = vmatprep.subr.mxu0 0.0
    %1501 = vmatpush1.msra.mxu0 0.0
    %1502 = vmatprep.subr.mxu0 0.0
    %1503 = vmatpush1.msra.mxu0 0.0
    %1504 = vmatprep.subr.mxu0 0.0
    %1505 = vmatpush1.msra.mxu0 0.0
    %1506 = vmatprep.subr.mxu0 0.0
    %1507 = vmatpush1.msra.mxu0 0.0
    %1508 = vmatprep.subr.mxu0 0.0
    %1509 = vmatpush1.msra.mxu0 0.0
    %1510 = vmatprep.subr.mxu0 0.0
    %1511 = vmatpush1.msra.mxu0 0.0
    %1512 = vmatprep.subr.mxu0 0.0
    %1513 = vmatpush1.msra.mxu0 0.0
    %1514 = vmatprep.subr.mxu0 0.0
    %1515 = vmatpush1.msra.mxu0 0.0
    %1516 = vmatprep.subr.mxu0 0.0
    %1517 = vmatpush1.msra.mxu0 0.0
    %1518 = vmatprep.subr.mxu0 0.0
    %1519 = vmatpush1.msra.mxu0 0.0
    %1520 = vmatprep.subr.mxu0 0.0
    %1521 = vmatpush1.msra.mxu0 0.0
    %1522 = vmatprep.subr.mxu0 0.0
    %1523 = vmatpush1.msra.mxu0 0.0
    %1524 = vmatprep.subr.mxu0 0.0
    %1525 = vmatpush1.msra.mxu0 0.0
    %1526 = vmatprep.subr.mxu0 0.0
    %1527 = vmatpush1.msra.mxu0 0.0
    %1528 = vmatprep.subr.mxu0 0.0
    %1529 = vmatpush1.msra.mxu0 0.0
    %1530 = vmatprep.subr.mxu0 0.0
    %1531 = vmatpush1.msra.mxu0 0.0
    %1532 = vmatprep.subr.mxu0 0.0
    %1533 = vmatpush1.msra.mxu0 0.0
    %1534 = vmatprep.subr.mxu0 0.0
    %1535 = vmatpush1.msra.mxu0 0.0
    %1536 = vmatprep.subr.mxu0 0.0
    %1537 = vmatpush1.msra.mxu0 0.0
    %1538 = vmatprep.subr.mxu0 0.0
    %1539 = vmatpush1.msra.mxu0 0.0
    %1540 = vmatprep.subr.mxu0 0.0
    %1541 = vmatpush1.msra.mxu0 0.0
    %1542 = vmatprep.subr.mxu0 0.0
    %1543 = vmatpush1.msra.mxu0 0.0
    %1544 = vmatprep.subr.mxu0 0.0
    %1545 = vmatpush1.msra.mxu0 0.0
    %1546 = vmatprep.subr.mxu0 0.0
    %1547 = vmatpush1.msra.mxu0 0.0
    %1548 = vmatprep.subr.mxu0 0.0
    %1549 = vmatpush1.msra.mxu0 0.0
    %1550 = vmatprep.subr.mxu0 0.0
    %1551 = vmatpush1.msra.mxu0 0.0
    %1552 = vmatprep.mubr.f32.mxu0 0.0
    %1553 = vmatmul.mubr.f32.gmra.mrb[0].mxu0 %v1480
    %v1554 = vpop.f32.mrb[0].mxu0
    %v1555 = vadd.f32 0.0, %v1554
    %v1556 = vpop.f32.mrb[0].mxu0
    %1557 = vmatprep.mubr.f32.mxu0 0.0
    %1558 = vmatmul.mubr.f32.gmra.mrb[0].mxu0 %v1483
    %v1559 = vpop.f32.mrb[0].mxu0
    %v1560 = vadd.f32 0.0, %v1559
    %v1561 = vpop.f32.mrb[0].mxu0
    %1562 = vdwg.mxu0
    %v1563 = vadd.f32 %v1475, %v1555
    %v1564 = vadd.f32 %v1476, %v1560
    %s1565 = scalar_lea.vmem %s3, 64
    %v1566 = vld [vmem:[%s1565] sm:$0x3f]
    %v1568 = vsel %vm867, %v862, 0
    %v1571 = vsel %vm867, %v863, 0
    %v1574 = vsel %vm874, %v1566, 0
    %1576 = vmatprep.subr.mxu0 0.0
    %1577 = vmatpush1.msra.mxu0 %v1574
    %1578 = vmatprep.subr.mxu0 0.0
    %1579 = vmatpush1.msra.mxu0 0.0
    %1580 = vmatprep.subr.mxu0 0.0
    %1581 = vmatpush1.msra.mxu0 0.0
    %1582 = vmatprep.subr.mxu0 0.0
    %1583 = vmatpush1.msra.mxu0 0.0
    %1584 = vmatprep.subr.mxu0 0.0
    %1585 = vmatpush1.msra.mxu0 0.0
    %1586 = vmatprep.subr.mxu0 0.0
    %1587 = vmatpush1.msra.mxu0 0.0
    %1588 = vmatprep.subr.mxu0 0.0
    %1589 = vmatpush1.msra.mxu0 0.0
    %1590 = vmatprep.subr.mxu0 0.0
    %1591 = vmatpush1.msra.mxu0 0.0
    %1592 = vmatprep.subr.mxu0 0.0
    %1593 = vmatpush1.msra.mxu0 0.0
    %1594 = vmatprep.subr.mxu0 0.0
    %1595 = vmatpush1.msra.mxu0 0.0
    %1596 = vmatprep.subr.mxu0 0.0
    %1597 = vmatpush1.msra.mxu0 0.0
    %1598 = vmatprep.subr.mxu0 0.0
    %1599 = vmatpush1.msra.mxu0 0.0
    %1600 = vmatprep.subr.mxu0 0.0
    %1601 = vmatpush1.msra.mxu0 0.0
    %1602 = vmatprep.subr.mxu0 0.0
    %1603 = vmatpush1.msra.mxu0 0.0
    %1604 = vmatprep.subr.mxu0 0.0
    %1605 = vmatpush1.msra.mxu0 0.0
    %1606 = vmatprep.subr.mxu0 0.0
    %1607 = vmatpush1.msra.mxu0 0.0
    %1608 = vmatprep.subr.mxu0 0.0
    %1609 = vmatpush1.msra.mxu0 0.0
    %1610 = vmatprep.subr.mxu0 0.0
    %1611 = vmatpush1.msra.mxu0 0.0
    %1612 = vmatprep.subr.mxu0 0.0
    %1613 = vmatpush1.msra.mxu0 0.0
    %1614 = vmatprep.subr.mxu0 0.0
    %1615 = vmatpush1.msra.mxu0 0.0
    %1616 = vmatprep.subr.mxu0 0.0
    %1617 = vmatpush1.msra.mxu0 0.0
    %1618 = vmatprep.subr.mxu0 0.0
    %1619 = vmatpush1.msra.mxu0 0.0
    %1620 = vmatprep.subr.mxu0 0.0
    %1621 = vmatpush1.msra.mxu0 0.0
    %1622 = vmatprep.subr.mxu0 0.0
    %1623 = vmatpush1.msra.mxu0 0.0
    %1624 = vmatprep.subr.mxu0 0.0
    %1625 = vmatpush1.msra.mxu0 0.0
    %1626 = vmatprep.subr.mxu0 0.0
    %1627 = vmatpush1.msra.mxu0 0.0
    %1628 = vmatprep.subr.mxu0 0.0
    %1629 = vmatpush1.msra.mxu0 0.0
    %1630 = vmatprep.subr.mxu0 0.0
    %1631 = vmatpush1.msra.mxu0 0.0
    %1632 = vmatprep.subr.mxu0 0.0
    %1633 = vmatpush1.msra.mxu0 0.0
    %1634 = vmatprep.subr.mxu0 0.0
    %1635 = vmatpush1.msra.mxu0 0.0
    %1636 = vmatprep.subr.mxu0 0.0
    %1637 = vmatpush1.msra.mxu0 0.0
    %1638 = vmatprep.subr.mxu0 0.0
    %1639 = vmatpush1.msra.mxu0 0.0
    %1640 = vmatprep.mubr.f32.mxu0 0.0
    %1641 = vmatmul.mubr.f32.gmra.mrb[0].mxu0 %v1568
    %v1642 = vpop.f32.mrb[0].mxu0
    %v1643 = vadd.f32 0.0, %v1642
    %v1644 = vpop.f32.mrb[0].mxu0
    %1645 = vmatprep.mubr.f32.mxu0 0.0
    %1646 = vmatmul.mubr.f32.gmra.mrb[0].mxu0 %v1571
    %v1647 = vpop.f32.mrb[0].mxu0
    %v1648 = vadd.f32 0.0, %v1647
    %v1649 = vpop.f32.mrb[0].mxu0
    %1650 = vdwg.mxu0
    %v1651 = vadd.f32 %v1563, %v1643
    %v1652 = vadd.f32 %v1564, %v1648
    %v1654 = vrot.slane %v1651, 4
    %v1656 = vmax.f32 %v1651, %v1654
    %v1658 = vrot.slane %v1652, 4
    %v1660 = vmax.f32 %v1652, %v1658
    %v1661 = vmax.f32 %v1656, %v1660
    %v1662 = vld [vmem:[%s4] sm:$0x1]
    %v1664 = vlaneseq
    %v1665 = vshrl.u32 %v1664, 7
    %v1666 = vsub.s32 0, %v1665
    %v1667 = vrot.slane %v1662, %v1666
    %v1669 = vadd.f32 %v1661, %v1667
    %v1670 = vmax.f32 %v1669, 0.0
    %v1671 = vld [vmem:[%s5] sm:$0xff]
    %v1672 = vld [vmem:[%s5 + $0x8] sm:$0xff]
    %v1673 = vld [vmem:[%s5 + $0x10] sm:$0xff]
    %v1674 = vld [vmem:[%s5 + $0x18] sm:$0xff]
    %v1675 = vld [vmem:[%s5 + $0x20] sm:$0xff]
    %v1676 = vld [vmem:[%s5 + $0x28] sm:$0xff]
    %v1677 = vld [vmem:[%s5 + $0x30] sm:$0xff]
    %v1678 = vld [vmem:[%s5 + $0x38] sm:$0xff]
    %v1679 = vld [vmem:[%s6] sm:$0x1]
    %vm1680 = vcmask 130048
    %v1682 = vsel %vm1680, %v1670, 0
    %1684 = vmatprep.subr.mxu0 0.0
    %1685 = vmatpush1.msra.mxu0 %v1671
    %1686 = vmatprep.subr.mxu0 0.0
    %1687 = vmatpush1.msra.mxu0 %v1672
    %1688 = vmatprep.subr.mxu0 0.0
    %1689 = vmatpush1.msra.mxu0 0.0
    %1690 = vmatprep.subr.mxu0 0.0
    %1691 = vmatpush1.msra.mxu0 0.0
    %1692 = vmatprep.subr.mxu0 0.0
    %1693 = vmatpush1.msra.mxu0 0.0
    %1694 = vmatprep.subr.mxu0 0.0
    %1695 = vmatpush1.msra.mxu0 0.0
    %1696 = vmatprep.subr.mxu0 0.0
    %1697 = vmatpush1.msra.mxu0 0.0
    %1698 = vmatprep.subr.mxu0 0.0
    %1699 = vmatpush1.msra.mxu0 0.0
    %1700 = vmatprep.subr.mxu0 0.0
    %1701 = vmatpush1.msra.mxu0 0.0
    %1702 = vmatprep.subr.mxu0 0.0
    %1703 = vmatpush1.msra.mxu0 0.0
    %1704 = vmatprep.subr.mxu0 0.0
    %1705 = vmatpush1.msra.mxu0 0.0
    %1706 = vmatprep.subr.mxu0 0.0
    %1707 = vmatpush1.msra.mxu0 0.0
    %1708 = vmatprep.subr.mxu0 0.0
    %1709 = vmatpush1.msra.mxu0 0.0
    %1710 = vmatprep.subr.mxu0 0.0
    %1711 = vmatpush1.msra.mxu0 0.0
    %1712 = vmatprep.subr.mxu0 0.0
    %1713 = vmatpush1.msra.mxu0 0.0
    %1714 = vmatprep.subr.mxu0 0.0
    %1715 = vmatpush1.msra.mxu0 0.0
    %1716 = vmatprep.subr.mxu0 0.0
    %1717 = vmatpush1.msra.mxu0 0.0
    %1718 = vmatprep.subr.mxu0 0.0
    %1719 = vmatpush1.msra.mxu0 0.0
    %1720 = vmatprep.subr.mxu0 0.0
    %1721 = vmatpush1.msra.mxu0 0.0
    %1722 = vmatprep.subr.mxu0 0.0
    %1723 = vmatpush1.msra.mxu0 0.0
    %1724 = vmatprep.subr.mxu0 0.0
    %1725 = vmatpush1.msra.mxu0 0.0
    %1726 = vmatprep.subr.mxu0 0.0
    %1727 = vmatpush1.msra.mxu0 0.0
    %1728 = vmatprep.subr.mxu0 0.0
    %1729 = vmatpush1.msra.mxu0 0.0
    %1730 = vmatprep.subr.mxu0 0.0
    %1731 = vmatpush1.msra.mxu0 0.0
    %1732 = vmatprep.subr.mxu0 0.0
    %1733 = vmatpush1.msra.mxu0 0.0
    %1734 = vmatprep.subr.mxu0 0.0
    %1735 = vmatpush1.msra.mxu0 0.0
    %1736 = vmatprep.subr.mxu0 0.0
    %1737 = vmatpush1.msra.mxu0 0.0
    %1738 = vmatprep.subr.mxu0 0.0
    %1739 = vmatpush1.msra.mxu0 0.0
    %1740 = vmatprep.subr.mxu0 0.0
    %1741 = vmatpush1.msra.mxu0 0.0
    %1742 = vmatprep.subr.mxu0 0.0
    %1743 = vmatpush1.msra.mxu0 0.0
    %1744 = vmatprep.subr.mxu0 0.0
    %1745 = vmatpush1.msra.mxu0 0.0
    %1746 = vmatprep.subr.mxu0 0.0
    %1747 = vmatpush1.msra.mxu0 0.0
    %1748 = vmatprep.mubr.f32.mxu0 0.0
    %1749 = vmatmul.mubr.f32.gmra.mrb[0].mxu0 %v1682
    %v1750 = vpop.f32.mrb[0].mxu0
    %v1751 = vadd.f32 0.0, %v1750
    %v1752 = vpop.f32.mrb[0].mxu0
    %1753 = vdwg.mxu0
    %v1754 = vadd.f32 %v1679, %v1751
    %v1755 = vrot.slane %v1670, 1
    %v1756 = vsel %vm1680, %v1755, 0
    %1758 = vmatprep.subr.mxu0 0.0
    %1759 = vmatpush1.msra.mxu0 %v1673
    %1760 = vmatprep.subr.mxu0 0.0
    %1761 = vmatpush1.msra.mxu0 %v1674
    %1762 = vmatprep.subr.mxu0 0.0
    %1763 = vmatpush1.msra.mxu0 0.0
    %1764 = vmatprep.subr.mxu0 0.0
    %1765 = vmatpush1.msra.mxu0 0.0
    %1766 = vmatprep.subr.mxu0 0.0
    %1767 = vmatpush1.msra.mxu0 0.0
    %1768 = vmatprep.subr.mxu0 0.0
    %1769 = vmatpush1.msra.mxu0 0.0
    %1770 = vmatprep.subr.mxu0 0.0
    %1771 = vmatpush1.msra.mxu0 0.0
    %1772 = vmatprep.subr.mxu0 0.0
    %1773 = vmatpush1.msra.mxu0 0.0
    %1774 = vmatprep.subr.mxu0 0.0
    %1775 = vmatpush1.msra.mxu0 0.0
    %1776 = vmatprep.subr.mxu0 0.0
    %1777 = vmatpush1.msra.mxu0 0.0
    %1778 = vmatprep.subr.mxu0 0.0
    %1779 = vmatpush1.msra.mxu0 0.0
    %1780 = vmatprep.subr.mxu0 0.0
    %1781 = vmatpush1.msra.mxu0 0.0
    %1782 = vmatprep.subr.mxu0 0.0
    %1783 = vmatpush1.msra.mxu0 0.0
    %1784 = vmatprep.subr.mxu0 0.0
    %1785 = vmatpush1.msra.mxu0 0.0
    %1786 = vmatprep.subr.mxu0 0.0
    %1787 = vmatpush1.msra.mxu0 0.0
    %1788 = vmatprep.subr.mxu0 0.0
    %1789 = vmatpush1.msra.mxu0 0.0
    %1790 = vmatprep.subr.mxu0 0.0
    %1791 = vmatpush1.msra.mxu0 0.0
    %1792 = vmatprep.subr.mxu0 0.0
    %1793 = vmatpush1.msra.mxu0 0.0
    %1794 = vmatprep.subr.mxu0 0.0
    %1795 = vmatpush1.msra.mxu0 0.0
    %1796 = vmatprep.subr.mxu0 0.0
    %1797 = vmatpush1.msra.mxu0 0.0
    %1798 = vmatprep.subr.mxu0 0.0
    %1799 = vmatpush1.msra.mxu0 0.0
    %1800 = vmatprep.subr.mxu0 0.0
    %1801 = vmatpush1.msra.mxu0 0.0
    %1802 = vmatprep.subr.mxu0 0.0
    %1803 = vmatpush1.msra.mxu0 0.0
    %1804 = vmatprep.subr.mxu0 0.0
    %1805 = vmatpush1.msra.mxu0 0.0
    %1806 = vmatprep.subr.mxu0 0.0
    %1807 = vmatpush1.msra.mxu0 0.0
    %1808 = vmatprep.subr.mxu0 0.0
    %1809 = vmatpush1.msra.mxu0 0.0
    %1810 = vmatprep.subr.mxu0 0.0
    %1811 = vmatpush1.msra.mxu0 0.0
    %1812 = vmatprep.subr.mxu0 0.0
    %1813 = vmatpush1.msra.mxu0 0.0
    %1814 = vmatprep.subr.mxu0 0.0
    %1815 = vmatpush1.msra.mxu0 0.0
    %1816 = vmatprep.subr.mxu0 0.0
    %1817 = vmatpush1.msra.mxu0 0.0
    %1818 = vmatprep.subr.mxu0 0.0
    %1819 = vmatpush1.msra.mxu0 0.0
    %1820 = vmatprep.subr.mxu0 0.0
    %1821 = vmatpush1.msra.mxu0 0.0
    %1822 = vmatprep.mubr.f32.mxu0 0.0
    %1823 = vmatmul.mubr.f32.gmra.mrb[0].mxu0 %v1756
    %v1824 = vpop.f32.mrb[0].mxu0
    %v1825 = vadd.f32 0.0, %v1824
    %v1826 = vpop.f32.mrb[0].mxu0
    %1827 = vdwg.mxu0
    %v1828 = vadd.f32 %v1754, %v1825
    %v1829 = vrot.slane %v1670, 2
    %v1830 = vsel %vm1680, %v1829, 0
    %1832 = vmatprep.subr.mxu0 0.0
    %1833 = vmatpush1.msra.mxu0 %v1675
    %1834 = vmatprep.subr.mxu0 0.0
    %1835 = vmatpush1.msra.mxu0 %v1676
    %1836 = vmatprep.subr.mxu0 0.0
    %1837 = vmatpush1.msra.mxu0 0.0
    %1838 = vmatprep.subr.mxu0 0.0
    %1839 = vmatpush1.msra.mxu0 0.0
    %1840 = vmatprep.subr.mxu0 0.0
    %1841 = vmatpush1.msra.mxu0 0.0
    %1842 = vmatprep.subr.mxu0 0.0
    %1843 = vmatpush1.msra.mxu0 0.0
    %1844 = vmatprep.subr.mxu0 0.0
    %1845 = vmatpush1.msra.mxu0 0.0
    %1846 = vmatprep.subr.mxu0 0.0
    %1847 = vmatpush1.msra.mxu0 0.0
    %1848 = vmatprep.subr.mxu0 0.0
    %1849 = vmatpush1.msra.mxu0 0.0
    %1850 = vmatprep.subr.mxu0 0.0
    %1851 = vmatpush1.msra.mxu0 0.0
    %1852 = vmatprep.subr.mxu0 0.0
    %1853 = vmatpush1.msra.mxu0 0.0
    %1854 = vmatprep.subr.mxu0 0.0
    %1855 = vmatpush1.msra.mxu0 0.0
    %1856 = vmatprep.subr.mxu0 0.0
    %1857 = vmatpush1.msra.mxu0 0.0
    %1858 = vmatprep.subr.mxu0 0.0
    %1859 = vmatpush1.msra.mxu0 0.0
    %1860 = vmatprep.subr.mxu0 0.0
    %1861 = vmatpush1.msra.mxu0 0.0
    %1862 = vmatprep.subr.mxu0 0.0
    %1863 = vmatpush1.msra.mxu0 0.0
    %1864 = vmatprep.subr.mxu0 0.0
    %1865 = vmatpush1.msra.mxu0 0.0
    %1866 = vmatprep.subr.mxu0 0.0
    %1867 = vmatpush1.msra.mxu0 0.0
    %1868 = vmatprep.subr.mxu0 0.0
    %1869 = vmatpush1.msra.mxu0 0.0
    %1870 = vmatprep.subr.mxu0 0.0
    %1871 = vmatpush1.msra.mxu0 0.0
    %1872 = vmatprep.subr.mxu0 0.0
    %1873 = vmatpush1.msra.mxu0 0.0
    %1874 = vmatprep.subr.mxu0 0.0
    %1875 = vmatpush1.msra.mxu0 0.0
    %1876 = vmatprep.subr.mxu0 0.0
    %1877 = vmatpush1.msra.mxu0 0.0
    %1878 = vmatprep.subr.mxu0 0.0
    %1879 = vmatpush1.msra.mxu0 0.0
    %1880 = vmatprep.subr.mxu0 0.0
    %1881 = vmatpush1.msra.mxu0 0.0
    %1882 = vmatprep.subr.mxu0 0.0
    %1883 = vmatpush1.msra.mxu0 0.0
    %1884 = vmatprep.subr.mxu0 0.0
    %1885 = vmatpush1.msra.mxu0 0.0
    %1886 = vmatprep.subr.mxu0 0.0
    %1887 = vmatpush1.msra.mxu0 0.0
    %1888 = vmatprep.subr.mxu0 0.0
    %1889 = vmatpush1.msra.mxu0 0.0
    %1890 = vmatprep.subr.mxu0 0.0
    %1891 = vmatpush1.msra.mxu0 0.0
    %1892 = vmatprep.subr.mxu0 0.0
    %1893 = vmatpush1.msra.mxu0 0.0
    %1894 = vmatprep.subr.mxu0 0.0
    %1895 = vmatpush1.msra.mxu0 0.0
    %1896 = vmatprep.mubr.f32.mxu0 0.0
    %1897 = vmatmul.mubr.f32.gmra.mrb[0].mxu0 %v1830
    %v1898 = vpop.f32.mrb[0].mxu0
    %v1899 = vadd.f32 0.0, %v1898
    %v1900 = vpop.f32.mrb[0].mxu0
    %1901 = vdwg.mxu0
    %v1902 = vadd.f32 %v1828, %v1899
    %v1903 = vrot.slane %v1670, 3
    %v1904 = vsel %vm1680, %v1903, 0
    %1906 = vmatprep.subr.mxu0 0.0
    %1907 = vmatpush1.msra.mxu0 %v1677
    %1908 = vmatprep.subr.mxu0 0.0
    %1909 = vmatpush1.msra.mxu0 %v1678
    %1910 = vmatprep.subr.mxu0 0.0
    %1911 = vmatpush1.msra.mxu0 0.0
    %1912 = vmatprep.subr.mxu0 0.0
    %1913 = vmatpush1.msra.mxu0 0.0
    %1914 = vmatprep.subr.mxu0 0.0
    %1915 = vmatpush1.msra.mxu0 0.0
    %1916 = vmatprep.subr.mxu0 0.0
    %1917 = vmatpush1.msra.mxu0 0.0
    %1918 = vmatprep.subr.mxu0 0.0
    %1919 = vmatpush1.msra.mxu0 0.0
    %1920 = vmatprep.subr.mxu0 0.0
    %1921 = vmatpush1.msra.mxu0 0.0
    %1922 = vmatprep.subr.mxu0 0.0
    %1923 = vmatpush1.msra.mxu0 0.0
    %1924 = vmatprep.subr.mxu0 0.0
    %1925 = vmatpush1.msra.mxu0 0.0
    %1926 = vmatprep.subr.mxu0 0.0
    %1927 = vmatpush1.msra.mxu0 0.0
    %1928 = vmatprep.subr.mxu0 0.0
    %1929 = vmatpush1.msra.mxu0 0.0
    %1930 = vmatprep.subr.mxu0 0.0
    %1931 = vmatpush1.msra.mxu0 0.0
    %1932 = vmatprep.subr.mxu0 0.0
    %1933 = vmatpush1.msra.mxu0 0.0
    %1934 = vmatprep.subr.mxu0 0.0
    %1935 = vmatpush1.msra.mxu0 0.0
    %1936 = vmatprep.subr.mxu0 0.0
    %1937 = vmatpush1.msra.mxu0 0.0
    %1938 = vmatprep.subr.mxu0 0.0
    %1939 = vmatpush1.msra.mxu0 0.0
    %1940 = vmatprep.subr.mxu0 0.0
    %1941 = vmatpush1.msra.mxu0 0.0
    %1942 = vmatprep.subr.mxu0 0.0
    %1943 = vmatpush1.msra.mxu0 0.0
    %1944 = vmatprep.subr.mxu0 0.0
    %1945 = vmatpush1.msra.mxu0 0.0
    %1946 = vmatprep.subr.mxu0 0.0
    %1947 = vmatpush1.msra.mxu0 0.0
    %1948 = vmatprep.subr.mxu0 0.0
    %1949 = vmatpush1.msra.mxu0 0.0
    %1950 = vmatprep.subr.mxu0 0.0
    %1951 = vmatpush1.msra.mxu0 0.0
    %1952 = vmatprep.subr.mxu0 0.0
    %1953 = vmatpush1.msra.mxu0 0.0
    %1954 = vmatprep.subr.mxu0 0.0
    %1955 = vmatpush1.msra.mxu0 0.0
    %1956 = vmatprep.subr.mxu0 0.0
    %1957 = vmatpush1.msra.mxu0 0.0
    %1958 = vmatprep.subr.mxu0 0.0
    %1959 = vmatpush1.msra.mxu0 0.0
    %1960 = vmatprep.subr.mxu0 0.0
    %1961 = vmatpush1.msra.mxu0 0.0
    %1962 = vmatprep.subr.mxu0 0.0
    %1963 = vmatpush1.msra.mxu0 0.0
    %1964 = vmatprep.subr.mxu0 0.0
    %1965 = vmatpush1.msra.mxu0 0.0
    %1966 = vmatprep.subr.mxu0 0.0
    %1967 = vmatpush1.msra.mxu0 0.0
    %1968 = vmatprep.subr.mxu0 0.0
    %1969 = vmatpush1.msra.mxu0 0.0
    %1970 = vmatprep.mubr.f32.mxu0 0.0
    %1971 = vmatmul.mubr.f32.gmra.mrb[0].mxu0 %v1904
    %v1972 = vpop.f32.mrb[0].mxu0
    %v1973 = vadd.f32 0.0, %v1972
    %v1974 = vpop.f32.mrb[0].mxu0
    %1975 = vdwg.mxu0
    %v1976 = vadd.f32 %v1902, %v1973
    %v1977 = vmax.f32 %v1976, 0.0
    %v1978 = vld [vmem:[%s7] sm:$0xff]
    %v1979 = vld [vmem:[%s7 + $0x8] sm:$0xff]
    %v1980 = vld [vmem:[%s7 + $0x10] sm:$0xff]
    %v1981 = vld [vmem:[%s7 + $0x18] sm:$0xff]
    %v1982 = vld [vmem:[%s7 + $0x20] sm:$0xff]
    %v1983 = vld [vmem:[%s7 + $0x28] sm:$0xff]
    %v1984 = vld [vmem:[%s7 + $0x30] sm:$0xff]
    %v1985 = vld [vmem:[%s7 + $0x38] sm:$0xff]
    %v1986 = vld [vmem:[%s7 + $0x40] sm:$0xff]
    %v1987 = vld [vmem:[%s7 + $0x48] sm:$0xff]
    %v1988 = vld [vmem:[%s7 + $0x50] sm:$0xff]
    %v1989 = vld [vmem:[%s7 + $0x58] sm:$0xff]
    %v1990 = vld [vmem:[%s7 + $0x60] sm:$0xff]
    %v1991 = vld [vmem:[%s7 + $0x68] sm:$0xff]
    %v1992 = vld [vmem:[%s7 + $0x70] sm:$0xff]
    %v1993 = vld [vmem:[%s8] sm:$0x1]
    %vm1994 = vcmask 982016
    %v1996 = vsel %vm1994, %v1977, 0
    %1998 = vmatprep.subr.mxu0 0.0
    %1999 = vmatpush1.msra.mxu0 %v1978
    %2000 = vmatprep.subr.mxu0 0.0
    %2001 = vmatpush1.msra.mxu0 %v1979
    %2002 = vmatprep.subr.mxu0 0.0
    %2003 = vmatpush1.msra.mxu0 %v1980
    %2004 = vmatprep.subr.mxu0 0.0
    %2005 = vmatpush1.msra.mxu0 %v1981
    %2006 = vmatprep.subr.mxu0 0.0
    %2007 = vmatpush1.msra.mxu0 %v1982
    %2008 = vmatprep.subr.mxu0 0.0
    %2009 = vmatpush1.msra.mxu0 %v1983
    %2010 = vmatprep.subr.mxu0 0.0
    %2011 = vmatpush1.msra.mxu0 %v1984
    %2012 = vmatprep.subr.mxu0 0.0
    %2013 = vmatpush1.msra.mxu0 %v1985
    %2014 = vmatprep.subr.mxu0 0.0
    %2015 = vmatpush1.msra.mxu0 %v1986
    %2016 = vmatprep.subr.mxu0 0.0
    %2017 = vmatpush1.msra.mxu0 %v1987
    %2018 = vmatprep.subr.mxu0 0.0
    %2019 = vmatpush1.msra.mxu0 %v1988
    %2020 = vmatprep.subr.mxu0 0.0
    %2021 = vmatpush1.msra.mxu0 %v1989
    %2022 = vmatprep.subr.mxu0 0.0
    %2023 = vmatpush1.msra.mxu0 %v1990
    %2024 = vmatprep.subr.mxu0 0.0
    %2025 = vmatpush1.msra.mxu0 %v1991
    %2026 = vmatprep.subr.mxu0 0.0
    %2027 = vmatpush1.msra.mxu0 %v1992
    %2028 = vmatprep.subr.mxu0 0.0
    %2029 = vmatpush1.msra.mxu0 0.0
    %2030 = vmatprep.subr.mxu0 0.0
    %2031 = vmatpush1.msra.mxu0 0.0
    %2032 = vmatprep.subr.mxu0 0.0
    %2033 = vmatpush1.msra.mxu0 0.0
    %2034 = vmatprep.subr.mxu0 0.0
    %2035 = vmatpush1.msra.mxu0 0.0
    %2036 = vmatprep.subr.mxu0 0.0
    %2037 = vmatpush1.msra.mxu0 0.0
    %2038 = vmatprep.subr.mxu0 0.0
    %2039 = vmatpush1.msra.mxu0 0.0
    %2040 = vmatprep.subr.mxu0 0.0
    %2041 = vmatpush1.msra.mxu0 0.0
    %2042 = vmatprep.subr.mxu0 0.0
    %2043 = vmatpush1.msra.mxu0 0.0
    %2044 = vmatprep.subr.mxu0 0.0
    %2045 = vmatpush1.msra.mxu0 0.0
    %2046 = vmatprep.subr.mxu0 0.0
    %2047 = vmatpush1.msra.mxu0 0.0
    %2048 = vmatprep.subr.mxu0 0.0
    %2049 = vmatpush1.msra.mxu0 0.0
    %2050 = vmatprep.subr.mxu0 0.0
    %2051 = vmatpush1.msra.mxu0 0.0
    %2052 = vmatprep.subr.mxu0 0.0
    %2053 = vmatpush1.msra.mxu0 0.0
    %2054 = vmatprep.subr.mxu0 0.0
    %2055 = vmatpush1.msra.mxu0 0.0
    %2056 = vmatprep.subr.mxu0 0.0
    %2057 = vmatpush1.msra.mxu0 0.0
    %2058 = vmatprep.subr.mxu0 0.0
    %2059 = vmatpush1.msra.mxu0 0.0
    %2060 = vmatprep.subr.mxu0 0.0
    %2061 = vmatpush1.msra.mxu0 0.0
    %2062 = vmatprep.mubr.f32.mxu0 0.0
    %2063 = vmatmul.mubr.f32.gmra.mrb[0].mxu0 %v1996
    %v2064 = vpop.f32.mrb[0].mxu0
    %v2065 = vadd.f32 %v1993, %v2064
    %v2066 = vpop.f32.mrb[0].mxu0
    %2067 = vdwg.mxu0
    %v2068 = vmax.f32 %v2065, 0.0
    %v2069 = vld [vmem:[%s9] sm:$0xff]
    %v2070 = vld [vmem:[%s9 + $0x8] sm:$0xff]
    %v2071 = vld [vmem:[%s9 + $0x10] sm:$0xff]
    %v2072 = vld [vmem:[%s9 + $0x18] sm:$0xff]
    %v2073 = vld [vmem:[%s9 + $0x20] sm:$0xff]
    %v2074 = vld [vmem:[%s9 + $0x28] sm:$0xff]
    %v2075 = vld [vmem:[%s9 + $0x30] sm:$0xff]
    %v2076 = vld [vmem:[%s9 + $0x38] sm:$0xff]
    %v2077 = vld [vmem:[%s9 + $0x40] sm:$0xff]
    %v2078 = vld [vmem:[%s9 + $0x48] sm:$0xff]
    %v2079 = vld [vmem:[%s9 + $0x50] sm:$0xf]
    %v2080 = vld [vmem:[%s10] sm:$0x1]
    %vm2081 = vcmask 687104
    %v2083 = vsel %vm2081, %v2068, 0
    %vm2085 = vcmask 1043456
    %v2087 = vsel %vm2085, %v2079, 0
    %2089 = vmatprep.subr.mxu0 0.0
    %2090 = vmatpush1.msra.mxu0 %v2069
    %2091 = vmatprep.subr.mxu0 0.0
    %2092 = vmatpush1.msra.mxu0 %v2070
    %2093 = vmatprep.subr.mxu0 0.0
    %2094 = vmatpush1.msra.mxu0 %v2071
    %2095 = vmatprep.subr.mxu0 0.0
    %2096 = vmatpush1.msra.mxu0 %v2072
    %2097 = vmatprep.subr.mxu0 0.0
    %2098 = vmatpush1.msra.mxu0 %v2073
    %2099 = vmatprep.subr.mxu0 0.0
    %2100 = vmatpush1.msra.mxu0 %v2074
    %2101 = vmatprep.subr.mxu0 0.0
    %2102 = vmatpush1.msra.mxu0 %v2075
    %2103 = vmatprep.subr.mxu0 0.0
    %2104 = vmatpush1.msra.mxu0 %v2076
    %2105 = vmatprep.subr.mxu0 0.0
    %2106 = vmatpush1.msra.mxu0 %v2077
    %2107 = vmatprep.subr.mxu0 0.0
    %2108 = vmatpush1.msra.mxu0 %v2078
    %2109 = vmatprep.subr.mxu0 0.0
    %2110 = vmatpush1.msra.mxu0 %v2087
    %2111 = vmatprep.subr.mxu0 0.0
    %2112 = vmatpush1.msra.mxu0 0.0
    %2113 = vmatprep.subr.mxu0 0.0
    %2114 = vmatpush1.msra.mxu0 0.0
    %2115 = vmatprep.subr.mxu0 0.0
    %2116 = vmatpush1.msra.mxu0 0.0
    %2117 = vmatprep.subr.mxu0 0.0
    %2118 = vmatpush1.msra.mxu0 0.0
    %2119 = vmatprep.subr.mxu0 0.0
    %2120 = vmatpush1.msra.mxu0 0.0
    %2121 = vmatprep.subr.mxu0 0.0
    %2122 = vmatpush1.msra.mxu0 0.0
    %2123 = vmatprep.subr.mxu0 0.0
    %2124 = vmatpush1.msra.mxu0 0.0
    %2125 = vmatprep.subr.mxu0 0.0
    %2126 = vmatpush1.msra.mxu0 0.0
    %2127 = vmatprep.subr.mxu0 0.0
    %2128 = vmatpush1.msra.mxu0 0.0
    %2129 = vmatprep.subr.mxu0 0.0
    %2130 = vmatpush1.msra.mxu0 0.0
    %2131 = vmatprep.subr.mxu0 0.0
    %2132 = vmatpush1.msra.mxu0 0.0
    %2133 = vmatprep.subr.mxu0 0.0
    %2134 = vmatpush1.msra.mxu0 0.0
    %2135 = vmatprep.subr.mxu0 0.0
    %2136 = vmatpush1.msra.mxu0 0.0
    %2137 = vmatprep.subr.mxu0 0.0
    %2138 = vmatpush1.msra.mxu0 0.0
    %2139 = vmatprep.subr.mxu0 0.0
    %2140 = vmatpush1.msra.mxu0 0.0
    %2141 = vmatprep.subr.mxu0 0.0
    %2142 = vmatpush1.msra.mxu0 0.0
    %2143 = vmatprep.subr.mxu0 0.0
    %2144 = vmatpush1.msra.mxu0 0.0
    %2145 = vmatprep.subr.mxu0 0.0
    %2146 = vmatpush1.msra.mxu0 0.0
    %2147 = vmatprep.subr.mxu0 0.0
    %2148 = vmatpush1.msra.mxu0 0.0
    %2149 = vmatprep.subr.mxu0 0.0
    %2150 = vmatpush1.msra.mxu0 0.0
    %2151 = vmatprep.subr.mxu0 0.0
    %2152 = vmatpush1.msra.mxu0 0.0
    %2153 = vmatprep.mubr.f32.mxu0 0.0
    %2154 = vmatmul.mubr.f32.gmra.mrb[0].mxu0 %v2083
    %v2155 = vpop.f32.mrb[0].mxu0
    %v2156 = vadd.f32 %v2080, %v2155
    %v2157 = vpop.f32.mrb[0].mxu0
    %2158 = vdwg.mxu0
    %vm2159 = vcmask 16384
    %2160 = vst.msk [vmem:[#allocation2] sm:$0x1] %vm2159, %v2156
    // Predicated region
    $region46: #{lenet_forward.1} parent=1 // pred_check
      _
    $region47: #{lenet_forward.1} parent=1 // pred_check_branch
      %2162 = sbr.rel (0) target = $region49
    $region48: #{lenet_forward.1} parent=1 // pred_region
      %s2164 = ssub.s32 16, 16
      %2165 = vsyncadd [#allocation3], %s2164
      %s2167 = sshll.u32 [#allocation2], 4
      %s2168 = int_to_ptr.vmem [resolvable:$true] %s2167
      %2170 = dma.vmem_to_hbm [thread:$0]  %s2168, 16, %s11, [#allocation3]
    $region49: #{lenet_forward.1} parent=1 // pred_fallthru
      _
    // Predicated region
    $region50: #{lenet_forward.1} parent=1 // pred_check
      _
    $region51: #{lenet_forward.1} parent=1 // pred_check_branch
      %2172 = sbr.rel (0) target = $region53
    $region52: #{lenet_forward.1} parent=1 // pred_region
      %2173 = dma.done [#allocation3], 16
    $region53: #{lenet_forward.1} parent=1 // pred_fallthru
      _
    %2174 = vsyncpa [#allocation3], 1

</llo_original>
